<compile_context>
chip_gen: v7x
topology: tpu7x:2x2x1
jax: 0.10.0
libtpu: 0.0.40
codegen_flags: <defaults>
</compile_context>

<pallas_src>
import math

import jax
import jax.numpy as jnp
import numpy as np
from jax.experimental import pallas as pl
from jax.experimental.pallas import tpu as pltpu

KSIZE = 19                 # wavelet taps (hard-coded in the PyTorch forward)
PAD = (KSIZE - 1) // 2     # 9 rows of 'same' zero padding per side
HALO = 16                  # halo-block rows (multiple of 8, >= PAD)


# ----------------------------------------------------------------------------- glue
def mexican_hat_wavelet(size, scale, shift):
    """JAX port of the reference mexican_hat_wavelet. Returns (size[0], size[1]) f32."""
    D, K = size
    xs = jnp.linspace(-(K - 1) // 2, (K - 1) // 2, K).astype(jnp.float32)  # (K,)
    xs = jnp.broadcast_to(xs.reshape(1, -1), (D, K))
    xs = xs - shift  # shift: (K,) broadcasts over taps
    C = 2.0 / (3.0 ** 0.5 * math.pi ** 0.25)
    w = (
        C
        * (1.0 - (xs / scale) ** 2)
        * jnp.exp(-((xs / scale) ** 2) / 2.0)
        / jnp.abs(scale) ** 0.5
    )
    return w.astype(jnp.float32)


def _summed_tap_coeffs(wave1, wave2, wave3):
    """Per-tap coefficients of kernel1+kernel2+kernel3.  The (2, 19) wave tensors
    broadcast scale/shift over channels, so every channel shares the same 19 taps
    (channel-constant kernel) — this is what lets the conv become a banded matmul."""
    c = jnp.zeros((KSIZE,), jnp.float32)
    for w in (wave1, wave2, wave3):
        c = c + mexican_hat_wavelet((1, KSIZE), w[0, :], w[1, :])[0]
    return np.asarray(jax.device_get(c), np.float32)


def _build_band_matrices(coeffs, tl):
    """Band (Toeplitz) matrices turning the depthwise 'same' cross-correlation into
    MXU matmuls:  pos = Tc @ x_tile + Tl @ left_halo + Tr @ right_halo."""
    Tc = np.zeros((tl, tl), np.float32)
    Tl = np.zeros((tl, HALO), np.float32)
    Tr = np.zeros((tl, HALO), np.float32)
    for t in range(tl):
        for k in range(KSIZE):
            s = t - PAD + k                  # source row, tile-local coordinates
            if 0 <= s < tl:
                Tc[t, s] = coeffs[k]
            elif s < 0:                      # left halo covers local rows [-HALO, 0)
                Tl[t, s + HALO] = coeffs[k]
            else:                            # right halo covers rows [tl, tl + HALO)
                Tr[t, s - tl] = coeffs[k]
    return Tc, Tl, Tr


# --------------------------------------------------------------------------- kernel
def _wavelet_enc_kernel(x_ref, xl_ref, xr_ref, bc_ref, bl_ref, br_ref,
                        wt_ref, b_ref, o_ref):
    """
    x_ref  : (1, TL, D)    current sequence tile (f32; also the residual)
    xl_ref : (1, HALO, D)  16 rows just left of the tile (clamped at the left edge)
    xr_ref : (1, HALO, D)  16 rows just right of the tile (clamped at the right edge)
    bc_ref : (TL, TL)      center band matrix (bf16 or f32)
    bl_ref : (TL, HALO)    left-halo band matrix
    br_ref : (TL, HALO)    right-halo band matrix
    wt_ref : (D, D)        proj_1 weight, transposed (bf16 or f32)
    b_ref  : (1, D)        proj_1 bias (f32)
    o_ref  : (1, TL, D)    output tile (f32)
    """
    j = pl.program_id(1)
    n_l = pl.num_programs(1)
    cdt = bc_ref.dtype                       # MXU operand dtype for the conv

    x = x_ref[0]                             # (TL, D) f32
    # 'same' zero padding: zero out-of-sequence halo rows at the two edges
    # (both masks fire when n_l == 1).
    xl = (xl_ref[0] * (j > 0).astype(jnp.float32)).astype(cdt)
    xr = (xr_ref[0] * (j < n_l - 1).astype(jnp.float32)).astype(cdt)

    # Channel-constant 19-tap depthwise conv as a banded matmul on the MXU
    # (f32 accumulation).  No VMEM window assembly needed.
    pos = jnp.dot(bc_ref[...], x.astype(cdt), preferred_element_type=jnp.float32)
    pos = pos + jnp.dot(bl_ref[...], xl, preferred_element_type=jnp.float32)
    pos = pos + jnp.dot(br_ref[...], xr, preferred_element_type=jnp.float32)

    # proj_1 (MXU) + bias + residual, fused into the output store.
    y = jnp.dot(pos.astype(wt_ref.dtype), wt_ref[...],
                preferred_element_type=jnp.float32)
    o_ref[0] = x + y + b_ref[...]


# -------------------------------------------------------------------------- wrapper
def _pick_seq_tile(L, D, B):
    """Sequence-tile length.
    * memory: keep the f32 (TL, D) tile <= ~4 MiB so double-buffered in/out tiles
      plus the (TL, TL) band matrix stay well inside v7x's 64 MiB VMEM.
    * compute: TL ~ 512 keeps the dense (TL, TL) x (TL, D) banded-conv matmul below
      the HBM stream time on every generation (v5e's 197 TF/s MXU is binding).
    * v7x megacore: make sure the parallel grid has >= 2 cells."""
    cap = max(HALO, min(512, ((4 << 20) // (4 * D)) // HALO * HALO))
    l_rounded = pl.cdiv(L, HALO) * HALO
    tl = max(HALO, min(cap, l_rounded))
    tl -= tl % HALO
    if B * pl.cdiv(l_rounded, tl) < 2 and l_rounded > HALO:
        tl = max(HALO, pl.cdiv(l_rounded, 2 * HALO) * HALO)
    return int(tl)


def _vmem_cap_bytes():
    cap = 48 * 1024 * 1024            # safe fallback (v7x has 64 MiB per TensorCore)
    try:
        cap = min(int(0.85 * pltpu.get_tpu_info().vmem_capacity_bytes),
                  100 * 1024 * 1024)
    except Exception:
        pass
    return cap


def _vmem_limit_bytes(tl, D, conv_bytes, wt_bytes):
    f32 = 4
    est = (2 * tl * D * f32                              # x center tile (2 buffers)
           + 2 * 2 * HALO * D * f32                      # left/right halo blocks
           + 2 * tl * D * f32                            # output tile (2 buffers)
           + 2 * (tl * tl + 2 * tl * HALO) * conv_bytes  # band matrices
           + 2 * (D * D * wt_bytes + D * f32))           # proj weight + bias
    return int(min(max(int(1.5 * est) + (4 << 20), 16 << 20), _vmem_cap_bytes()))


def wavelet_encoding(x, wave1, wave2, wave3, proj1_w, proj1_b,
                     *, tl=None, matmul_in_bf16=True):
    """x: (B, L, D) float32, any L >= 1. Returns (B, L, D) float32."""
    B, L, D = x.shape
    if tl is None:
        tl = _pick_seq_tile(L, D, B)
    tl = int(tl)
    if tl % HALO != 0 or tl < HALO:
        raise ValueError(f"tl={tl} must be a positive multiple of {HALO}")

    n_l = pl.cdiv(L, tl)
    Lp = n_l * tl
    # One-off tail pad (< tl rows). Zero rows match 'same' zero-padding semantics for
    # the conv; padded output rows are sliced off below.
    xp = x if Lp == L else jnp.pad(x, ((0, 0), (0, Lp - L), (0, 0)))

    conv_dtype = jnp.bfloat16 if matmul_in_bf16 else jnp.float32
    coeffs = _summed_tap_coeffs(wave1, wave2, wave3)
    Tc, Tl, Tr = _build_band_matrices(coeffs, tl)
    Tc = jnp.asarray(Tc, conv_dtype)
    Tl = jnp.asarray(Tl, conv_dtype)
    Tr = jnp.asarray(Tr, conv_dtype)

    wt = jnp.asarray(proj1_w).T                         # y = pos @ W^T + b
    if matmul_in_bf16:
        wt = wt.astype(jnp.bfloat16)
    bias = jnp.asarray(proj1_b, jnp.float32).reshape(1, D)

    r = tl // HALO          # halo blocks per sequence tile
    n_hb = Lp // HALO       # total halo blocks along the (padded) sequence

    def build(single_buffer_consts):
        def const_spec(shape):
            if single_buffer_consts:
                return pl.BlockSpec(shape, lambda b, j: tuple(0 for _ in shape),
                                    pipeline_mode=pl.Buffered(1))
            return pl.BlockSpec(shape, lambda b, j: tuple(0 for _ in shape))

        grid_spec = pltpu.PrefetchScalarGridSpec(
            num_scalar_prefetch=0,
            grid=(B, n_l),
            in_specs=[
                # center tile of x (only full-x HBM stream)
                pl.BlockSpec((1, tl, D), lambda b, j: (b, j, 0)),
                # 16-row block immediately left / right of the tile (same x array);
                # clamped at the edges and zero-masked inside the kernel.
                pl.BlockSpec((1, HALO, D),
                             lambda b, j: (b, jnp.maximum(j * r - 1, 0), 0)),
                pl.BlockSpec((1, HALO, D),
                             lambda b, j: (b, jnp.minimum((j + 1) * r, n_hb - 1), 0)),
                const_spec((tl, tl)),      # center band matrix
                const_spec((tl, HALO)),    # left-halo band matrix
                const_spec((tl, HALO)),    # right-halo band matrix
                const_spec((D, D)),        # proj_1 weight (transposed)
                const_spec((1, D)),        # proj_1 bias
            ],
            out_specs=pl.BlockSpec((1, tl, D), lambda b, j: (b, j, 0)),
        )
        return pl.pallas_call(
            _wavelet_enc_kernel,
            out_shape=jax.ShapeDtypeStruct((B, Lp, D), jnp.float32),
            grid_spec=grid_spec,
            compiler_params=pltpu.CompilerParams(
                dimension_semantics=("parallel", "parallel"),
                vmem_limit_bytes=_vmem_limit_bytes(
                    tl, D, jnp.dtype(conv_dtype).itemsize, wt.dtype.itemsize)),
        )

    args = (xp, xp, xp, Tc, Tl, Tr, wt, bias)
    try:
        # Preferred: single-buffered constant operands (saves VMEM, zero perf risk).
        out = jax.block_until_ready(build(True)(*args))
    except Exception:
        # Fallback if this Pallas build rejects Buffered(1).
        out = build(False)(*args)

    return out[:, :L, :] if Lp != L else out


# ----------------------------------------------------------------- float64 reference
def _reference_forward(x, wave1, wave2, wave3, proj1_w, proj1_b):
    """numpy float64 reference with the exact semantics of the PyTorch module."""
    x = np.asarray(jax.device_get(x), np.float64)
    w = np.asarray(jax.device_get(proj1_w), np.float64)
    b = np.asarray(jax.device_get(proj1_b), np.float64)
    B, L, D = x.shape
    ker = np.zeros((D, KSIZE), np.float64)
    for wv in (wave1, wave2, wave3):
        ker += np.asarray(jax.device_get(
            mexican_hat_wavelet((D, KSIZE), wv[0, :], wv[1, :])), np.float64)
    xp = np.pad(x, ((0, 0), (PAD, PAD), (0, 0)))
    pos = np.zeros_like(x)
    for k in range(KSIZE):  # depthwise 'same' cross-correlation (= F.conv1d)
        pos += ker[:, k][None, None, :] * xp[:, k:k + L, :]
    return x + pos @ w.T + b


# ------------------------------------------------------------------------------ main
if __name__ == "__main__":
    # Small but representative shapes: lane-dense D (multiple of 128), L tiled by 16.
    B, L, D = 2, 64, 128

    key = jax.random.PRNGKey(0)
    kx, kw1, kw2, kw3, kpw, kpb = jax.random.split(key, 6)

    x = jax.random.normal(kx, (B, L, D), dtype=jnp.float32)

    def make_wave(k):
        ks, kh = jax.random.split(k)
        scale = jax.random.uniform(ks, (KSIZE,), minval=0.5, maxval=2.0)
        shift = jax.random.uniform(kh, (KSIZE,), minval=-1.0, maxval=1.0)
        return jnp.stack([scale, shift], axis=0).astype(jnp.float32)  # (2, 19)

    wave1, wave2, wave3 = make_wave(kw1), make_wave(kw2), make_wave(kw3)

    bound = 1.0 / math.sqrt(D)
    proj1_w = jax.random.uniform(kpw, (D, D), dtype=jnp.float32,
                                 minval=-bound, maxval=bound)
    proj1_b = jax.random.uniform(kpb, (D,), dtype=jnp.float32,
                                 minval=-bound, maxval=bound)

    # 1) production-style config: sequence tiled (tl=16 -> 4 tiles/batch, exercises
    #    the neighbour-halo path) with bf16 MXU operands (f32 accumulation).
    out_bf16 = wavelet_encoding(x, wave1, wave2, wave3, proj1_w, proj1_b,
                                tl=16, matmul_in_bf16=True)
    out_bf16 = jax.block_until_ready(out_bf16)
    ref = _reference_forward(x, wave1, wave2, wave3, proj1_w, proj1_b)
    np.testing.assert_allclose(np.asarray(out_bf16), ref, rtol=1e-1, atol=1e-1)

    # 2) ragged sequence length (L=50, not a multiple of 16) with f32 operands:
    #    exercises the cdiv + host tail-pad path and the fully-masked-halo tile.
    x2 = x[:, :50, :]
    out_f32 = wavelet_encoding(x2, wave1, wave2, wave3, proj1_w, proj1_b,
                               matmul_in_bf16=False)
    out_f32 = jax.block_until_ready(out_f32)
    ref2 = _reference_forward(x2, wave1, wave2, wave3, proj1_w, proj1_b)
    np.testing.assert_allclose(np.asarray(out_f32), ref2, rtol=2e-2, atol=2e-2)

    print("KERNEL_OK")
</pallas_src>

<mosaic_0001>
module attributes {stable_mosaic.version = 11 : i64} {
  func.func @_wavelet_enc_kernel(%arg0: i32, %arg1: i32, %arg2: memref<1x16x128xf32, #tpu.memory_space<vmem>>, %arg3: memref<1x16x128xf32, #tpu.memory_space<vmem>>, %arg4: memref<1x16x128xf32, #tpu.memory_space<vmem>>, %arg5: memref<16x16xbf16, #tpu.memory_space<vmem>>, %arg6: memref<16x16xbf16, #tpu.memory_space<vmem>>, %arg7: memref<16x16xbf16, #tpu.memory_space<vmem>>, %arg8: memref<128x128xbf16, #tpu.memory_space<vmem>>, %arg9: memref<1x128xf32, #tpu.memory_space<vmem>>, %arg10: memref<1x16x128xf32, #tpu.memory_space<vmem>>) attributes {dimension_semantics = [#tpu.dimension_semantics<parallel>, #tpu.dimension_semantics<parallel>], iteration_bounds = array<i64: 2, 4>, scalar_prefetch = 0 : i64, scratch_operands = 0 : i64, tpu.core_type = #tpu.core_type<tc>, window_params = [{transform_indices = @transform_0, window_bounds = array<i64: 1, 16, 128>}, {transform_indices = @transform_1, window_bounds = array<i64: 1, 16, 128>}, {transform_indices = @transform_2, window_bounds = array<i64: 1, 16, 128>}, {pipeline_mode = #tpu.pipeline_mode<synchronous>, transform_indices = @transform_3, window_bounds = array<i64: 16, 16>}, {pipeline_mode = #tpu.pipeline_mode<synchronous>, transform_indices = @transform_4, window_bounds = array<i64: 16, 16>}, {pipeline_mode = #tpu.pipeline_mode<synchronous>, transform_indices = @transform_5, window_bounds = array<i64: 16, 16>}, {pipeline_mode = #tpu.pipeline_mode<synchronous>, transform_indices = @transform_6, window_bounds = array<i64: 128, 128>}, {pipeline_mode = #tpu.pipeline_mode<synchronous>, transform_indices = @transform_7, window_bounds = array<i64: 1, 128>}, {transform_indices = @transform_8, window_bounds = array<i64: 1, 16, 128>}]} {
    %c0 = arith.constant 0 : index
    %c0_0 = arith.constant 0 : index
    %c0_1 = arith.constant 0 : index
    %0 = vector.load %arg2[%c0, %c0_0, %c0_1] : memref<1x16x128xf32, #tpu.memory_space<vmem>>, vector<1x16x128xf32>
    %1 = vector.shape_cast %0 : vector<1x16x128xf32> to vector<16x128xf32>
    %c0_2 = arith.constant 0 : index
    %c0_3 = arith.constant 0 : index
    %c0_4 = arith.constant 0 : index
    %2 = vector.load %arg3[%c0_2, %c0_3, %c0_4] : memref<1x16x128xf32, #tpu.memory_space<vmem>>, vector<1x16x128xf32>
    %3 = vector.shape_cast %2 : vector<1x16x128xf32> to vector<16x128xf32>
    %c0_i32 = arith.constant 0 : i32
    %4 = arith.cmpi sgt, %arg1, %c0_i32 : i32
    %5 = arith.extui %4 : i1 to i32
    %6 = arith.sitofp %5 : i32 to f32
    %7 = vector.broadcast %6 : f32 to vector<16x128xf32>
    %8 = arith.mulf %3, %7 : vector<16x128xf32>
    %9 = arith.truncf %8 : vector<16x128xf32> to vector<16x128xbf16>
    %c0_5 = arith.constant 0 : index
    %c0_6 = arith.constant 0 : index
    %c0_7 = arith.constant 0 : index
    %10 = vector.load %arg4[%c0_5, %c0_6, %c0_7] : memref<1x16x128xf32, #tpu.memory_space<vmem>>, vector<1x16x128xf32>
    %11 = vector.shape_cast %10 : vector<1x16x128xf32> to vector<16x128xf32>
    %c3_i32 = arith.constant 3 : i32
    %12 = arith.cmpi slt, %arg1, %c3_i32 : i32
    %13 = arith.extui %12 : i1 to i32
    %14 = arith.sitofp %13 : i32 to f32
    %15 = vector.broadcast %14 : f32 to vector<16x128xf32>
    %16 = arith.mulf %11, %15 : vector<16x128xf32>
    %17 = arith.truncf %16 : vector<16x128xf32> to vector<16x128xbf16>
    %c0_8 = arith.constant 0 : index
    %c0_9 = arith.constant 0 : index
    %18 = vector.load %arg5[%c0_8, %c0_9] : memref<16x16xbf16, #tpu.memory_space<vmem>>, vector<16x16xbf16>
    %19 = arith.truncf %1 : vector<16x128xf32> to vector<16x128xbf16>
    %cst = arith.constant dense<0.000000e+00> : vector<16x128xf32>
    %20 = tpu.matmul %18, %19, %cst {dimension_numbers = #tpu.dot_dimension_numbers<[1], [0], [0], [1], [0, 0, 1, 1], [], []>} : vector<16x16xbf16>, vector<16x128xbf16>, vector<16x128xf32> -> vector<16x128xf32>
    %c0_10 = arith.constant 0 : index
    %c0_11 = arith.constant 0 : index
    %21 = vector.load %arg6[%c0_10, %c0_11] : memref<16x16xbf16, #tpu.memory_space<vmem>>, vector<16x16xbf16>
    %cst_12 = arith.constant dense<0.000000e+00> : vector<16x128xf32>
    %22 = tpu.matmul %21, %9, %cst_12 {dimension_numbers = #tpu.dot_dimension_numbers<[1], [0], [0], [1], [0, 0, 1, 1], [], []>} : vector<16x16xbf16>, vector<16x128xbf16>, vector<16x128xf32> -> vector<16x128xf32>
    %23 = arith.addf %20, %22 : vector<16x128xf32>
    %c0_13 = arith.constant 0 : index
    %c0_14 = arith.constant 0 : index
    %24 = vector.load %arg7[%c0_13, %c0_14] : memref<16x16xbf16, #tpu.memory_space<vmem>>, vector<16x16xbf16>
    %cst_15 = arith.constant dense<0.000000e+00> : vector<16x128xf32>
    %25 = tpu.matmul %24, %17, %cst_15 {dimension_numbers = #tpu.dot_dimension_numbers<[1], [0], [0], [1], [0, 0, 1, 1], [], []>} : vector<16x16xbf16>, vector<16x128xbf16>, vector<16x128xf32> -> vector<16x128xf32>
    %26 = arith.addf %23, %25 : vector<16x128xf32>
    %27 = arith.truncf %26 : vector<16x128xf32> to vector<16x128xbf16>
    %c0_16 = arith.constant 0 : index
    %c0_17 = arith.constant 0 : index
    %28 = vector.load %arg8[%c0_16, %c0_17] : memref<128x128xbf16, #tpu.memory_space<vmem>>, vector<128x128xbf16>
    %cst_18 = arith.constant dense<0.000000e+00> : vector<16x128xf32>
    %29 = tpu.matmul %27, %28, %cst_18 {dimension_numbers = #tpu.dot_dimension_numbers<[1], [0], [0], [1], [0, 0, 1, 1], [], []>} : vector<16x128xbf16>, vector<128x128xbf16>, vector<16x128xf32> -> vector<16x128xf32>
    %30 = arith.addf %1, %29 : vector<16x128xf32>
    %c0_19 = arith.constant 0 : index
    %c0_20 = arith.constant 0 : index
    %31 = vector.load %arg9[%c0_19, %c0_20] : memref<1x128xf32, #tpu.memory_space<vmem>>, vector<1x128xf32>
    %32 = vector.broadcast %31 : vector<1x128xf32> to vector<16x128xf32>
    %33 = arith.addf %30, %32 : vector<16x128xf32>
    %c0_21 = arith.constant 0 : index
    %c0_22 = arith.constant 0 : index
    %c0_23 = arith.constant 0 : index
    %34 = vector.load %arg10[%c0_21, %c0_22, %c0_23] : memref<1x16x128xf32, #tpu.memory_space<vmem>>, vector<1x16x128xf32>
    %35 = vector.shape_cast %34 : vector<1x16x128xf32> to vector<16x128xf32>
    %36 = vector.shape_cast %33 : vector<16x128xf32> to vector<1x16x128xf32>
    tpu.vector_store %arg10[%c0_21, %c0_22, %c0_23], %36 {strides = array<i32>} : memref<1x16x128xf32, #tpu.memory_space<vmem>>, vector<1x16x128xf32>,
    return
  }
  func.func @transform_0(%arg0: i32, %arg1: i32) -> (i32, i32, i32) {
    %c0_i32 = arith.constant 0 : i32
    %c0_i32_0 = arith.constant 0 : i32
    return %arg0, %arg1, %c0_i32 : i32, i32, i32
  }
  func.func @transform_1(%arg0: i32, %arg1: i32) -> (i32, i32, i32) {
    %c1_i32 = arith.constant 1 : i32
    %0 = arith.muli %arg1, %c1_i32 : i32
    %c1_i32_0 = arith.constant 1 : i32
    %1 = arith.subi %0, %c1_i32_0 : i32
    %c0_i32 = arith.constant 0 : i32
    %2 = arith.maxsi %1, %c0_i32 : i32
    %c0_i32_1 = arith.constant 0 : i32
    %c0_i32_2 = arith.constant 0 : i32
    return %arg0, %2, %c0_i32_1 : i32, i32, i32
  }
  func.func @transform_2(%arg0: i32, %arg1: i32) -> (i32, i32, i32) {
    %c1_i32 = arith.constant 1 : i32
    %0 = arith.addi %arg1, %c1_i32 : i32
    %c1_i32_0 = arith.constant 1 : i32
    %1 = arith.muli %0, %c1_i32_0 : i32
    %c3_i32 = arith.constant 3 : i32
    %2 = arith.minsi %1, %c3_i32 : i32
    %c0_i32 = arith.constant 0 : i32
    %c0_i32_1 = arith.constant 0 : i32
    return %arg0, %2, %c0_i32 : i32, i32, i32
  }
  func.func @transform_3(%arg0: i32, %arg1: i32) -> (i32, i32) {
    %c0_i32 = arith.constant 0 : i32
    %c0_i32_0 = arith.constant 0 : i32
    %c0_i32_1 = arith.constant 0 : i32
    return %c0_i32, %c0_i32_0 : i32, i32
  }
  func.func @transform_4(%arg0: i32, %arg1: i32) -> (i32, i32) {
    %c0_i32 = arith.constant 0 : i32
    %c0_i32_0 = arith.constant 0 : i32
    %c0_i32_1 = arith.constant 0 : i32
    return %c0_i32, %c0_i32_0 : i32, i32
  }
  func.func @transform_5(%arg0: i32, %arg1: i32) -> (i32, i32) {
    %c0_i32 = arith.constant 0 : i32
    %c0_i32_0 = arith.constant 0 : i32
    %c0_i32_1 = arith.constant 0 : i32
    return %c0_i32, %c0_i32_0 : i32, i32
  }
  func.func @transform_6(%arg0: i32, %arg1: i32) -> (i32, i32) {
    %c0_i32 = arith.constant 0 : i32
    %c0_i32_0 = arith.constant 0 : i32
    %c0_i32_1 = arith.constant 0 : i32
    return %c0_i32, %c0_i32_0 : i32, i32
  }
  func.func @transform_7(%arg0: i32, %arg1: i32) -> (i32, i32) {
    %c0_i32 = arith.constant 0 : i32
    %c0_i32_0 = arith.constant 0 : i32
    %c0_i32_1 = arith.constant 0 : i32
    return %c0_i32, %c0_i32_0 : i32, i32
  }
  func.func @transform_8(%arg0: i32, %arg1: i32) -> (i32, i32, i32) {
    %c0_i32 = arith.constant 0 : i32
    %c0_i32_0 = arith.constant 0 : i32
    return %arg0, %arg1, %c0_i32 : i32, i32, i32
  }
}

module attributes {stable_mosaic.version = 11 : i64} {
  func.func @_wavelet_enc_kernel(%arg0: i32, %arg1: i32, %arg2: memref<1x16x128xf32, #tpu.memory_space<vmem>>, %arg3: memref<1x16x128xf32, #tpu.memory_space<vmem>>, %arg4: memref<1x16x128xf32, #tpu.memory_space<vmem>>, %arg5: memref<16x16xbf16, #tpu.memory_space<vmem>>, %arg6: memref<16x16xbf16, #tpu.memory_space<vmem>>, %arg7: memref<16x16xbf16, #tpu.memory_space<vmem>>, %arg8: memref<128x128xbf16, #tpu.memory_space<vmem>>, %arg9: memref<1x128xf32, #tpu.memory_space<vmem>>, %arg10: memref<1x16x128xf32, #tpu.memory_space<vmem>>) attributes {dimension_semantics = [#tpu.dimension_semantics<parallel>, #tpu.dimension_semantics<parallel>], iteration_bounds = array<i64: 2, 4>, scalar_prefetch = 0 : i64, scratch_operands = 0 : i64, tpu.core_type = #tpu.core_type<tc>, window_params = [{transform_indices = @transform_0, window_bounds = array<i64: 1, 16, 128>}, {transform_indices = @transform_1, window_bounds = array<i64: 1, 16, 128>}, {transform_indices = @transform_2, window_bounds = array<i64: 1, 16, 128>}, {pipeline_mode = #tpu.pipeline_mode<synchronous>, transform_indices = @transform_3, window_bounds = array<i64: 16, 16>}, {pipeline_mode = #tpu.pipeline_mode<synchronous>, transform_indices = @transform_4, window_bounds = array<i64: 16, 16>}, {pipeline_mode = #tpu.pipeline_mode<synchronous>, transform_indices = @transform_5, window_bounds = array<i64: 16, 16>}, {pipeline_mode = #tpu.pipeline_mode<synchronous>, transform_indices = @transform_6, window_bounds = array<i64: 128, 128>}, {pipeline_mode = #tpu.pipeline_mode<synchronous>, transform_indices = @transform_7, window_bounds = array<i64: 1, 128>}, {transform_indices = @transform_8, window_bounds = array<i64: 1, 16, 128>}]} {
    %c0 = arith.constant 0 : index
    %c0_0 = arith.constant 0 : index
    %c0_1 = arith.constant 0 : index
    %0 = vector.load %arg2[%c0, %c0_0, %c0_1] : memref<1x16x128xf32, #tpu.memory_space<vmem>>, vector<1x16x128xf32>
    %1 = vector.shape_cast %0 : vector<1x16x128xf32> to vector<16x128xf32>
    %c0_2 = arith.constant 0 : index
    %c0_3 = arith.constant 0 : index
    %c0_4 = arith.constant 0 : index
    %2 = vector.load %arg3[%c0_2, %c0_3, %c0_4] : memref<1x16x128xf32, #tpu.memory_space<vmem>>, vector<1x16x128xf32>
    %3 = vector.shape_cast %2 : vector<1x16x128xf32> to vector<16x128xf32>
    %c0_i32 = arith.constant 0 : i32
    %4 = arith.cmpi sgt, %arg1, %c0_i32 : i32
    %5 = arith.extui %4 : i1 to i32
    %6 = arith.sitofp %5 : i32 to f32
    %7 = vector.broadcast %6 : f32 to vector<16x128xf32>
    %8 = arith.mulf %3, %7 : vector<16x128xf32>
    %9 = arith.truncf %8 : vector<16x128xf32> to vector<16x128xbf16>
    %c0_5 = arith.constant 0 : index
    %c0_6 = arith.constant 0 : index
    %c0_7 = arith.constant 0 : index
    %10 = vector.load %arg4[%c0_5, %c0_6, %c0_7] : memref<1x16x128xf32, #tpu.memory_space<vmem>>, vector<1x16x128xf32>
    %11 = vector.shape_cast %10 : vector<1x16x128xf32> to vector<16x128xf32>
    %c3_i32 = arith.constant 3 : i32
    %12 = arith.cmpi slt, %arg1, %c3_i32 : i32
    %13 = arith.extui %12 : i1 to i32
    %14 = arith.sitofp %13 : i32 to f32
    %15 = vector.broadcast %14 : f32 to vector<16x128xf32>
    %16 = arith.mulf %11, %15 : vector<16x128xf32>
    %17 = arith.truncf %16 : vector<16x128xf32> to vector<16x128xbf16>
    %c0_8 = arith.constant 0 : index
    %c0_9 = arith.constant 0 : index
    %18 = vector.load %arg5[%c0_8, %c0_9] : memref<16x16xbf16, #tpu.memory_space<vmem>>, vector<16x16xbf16>
    %19 = arith.truncf %1 : vector<16x128xf32> to vector<16x128xbf16>
    %cst = arith.constant dense<0.000000e+00> : vector<16x128xf32>
    %20 = tpu.matmul %18, %19, %cst {dimension_numbers = #tpu.dot_dimension_numbers<[1], [0], [0], [1], [0, 0, 1, 1], [], []>} : vector<16x16xbf16>, vector<16x128xbf16>, vector<16x128xf32> -> vector<16x128xf32>
    %c0_10 = arith.constant 0 : index
    %c0_11 = arith.constant 0 : index
    %21 = vector.load %arg6[%c0_10, %c0_11] : memref<16x16xbf16, #tpu.memory_space<vmem>>, vector<16x16xbf16>
    %cst_12 = arith.constant dense<0.000000e+00> : vector<16x128xf32>
    %22 = tpu.matmul %21, %9, %cst_12 {dimension_numbers = #tpu.dot_dimension_numbers<[1], [0], [0], [1], [0, 0, 1, 1], [], []>} : vector<16x16xbf16>, vector<16x128xbf16>, vector<16x128xf32> -> vector<16x128xf32>
    %23 = arith.addf %20, %22 : vector<16x128xf32>
    %c0_13 = arith.constant 0 : index
    %c0_14 = arith.constant 0 : index
    %24 = vector.load %arg7[%c0_13, %c0_14] : memref<16x16xbf16, #tpu.memory_space<vmem>>, vector<16x16xbf16>
    %cst_15 = arith.constant dense<0.000000e+00> : vector<16x128xf32>
    %25 = tpu.matmul %24, %17, %cst_15 {dimension_numbers = #tpu.dot_dimension_numbers<[1], [0], [0], [1], [0, 0, 1, 1], [], []>} : vector<16x16xbf16>, vector<16x128xbf16>, vector<16x128xf32> -> vector<16x128xf32>
    %26 = arith.addf %23, %25 : vector<16x128xf32>
    %27 = arith.truncf %26 : vector<16x128xf32> to vector<16x128xbf16>
    %c0_16 = arith.constant 0 : index
    %c0_17 = arith.constant 0 : index
    %28 = vector.load %arg8[%c0_16, %c0_17] : memref<128x128xbf16, #tpu.memory_space<vmem>>, vector<128x128xbf16>
    %cst_18 = arith.constant dense<0.000000e+00> : vector<16x128xf32>
    %29 = tpu.matmul %27, %28, %cst_18 {dimension_numbers = #tpu.dot_dimension_numbers<[1], [0], [0], [1], [0, 0, 1, 1], [], []>} : vector<16x128xbf16>, vector<128x128xbf16>, vector<16x128xf32> -> vector<16x128xf32>
    %30 = arith.addf %1, %29 : vector<16x128xf32>
    %c0_19 = arith.constant 0 : index
    %c0_20 = arith.constant 0 : index
    %31 = vector.load %arg9[%c0_19, %c0_20] : memref<1x128xf32, #tpu.memory_space<vmem>>, vector<1x128xf32>
    %32 = vector.broadcast %31 : vector<1x128xf32> to vector<16x128xf32>
    %33 = arith.addf %30, %32 : vector<16x128xf32>
    %c0_21 = arith.constant 0 : index
    %c0_22 = arith.constant 0 : index
    %c0_23 = arith.constant 0 : index
    %34 = vector.load %arg10[%c0_21, %c0_22, %c0_23] : memref<1x16x128xf32, #tpu.memory_space<vmem>>, vector<1x16x128xf32>
    %35 = vector.shape_cast %34 : vector<1x16x128xf32> to vector<16x128xf32>
    %36 = vector.shape_cast %33 : vector<16x128xf32> to vector<1x16x128xf32>
    tpu.vector_store %arg10[%c0_21, %c0_22, %c0_23], %36 {strides = array<i32>} : memref<1x16x128xf32, #tpu.memory_space<vmem>>, vector<1x16x128xf32>,
    return
  }
  func.func @transform_0(%arg0: i32, %arg1: i32) -> (i32, i32, i32) {
    %c0_i32 = arith.constant 0 : i32
    %c0_i32_0 = arith.constant 0 : i32
    return %arg0, %arg1, %c0_i32 : i32, i32, i32
  }
  func.func @transform_1(%arg0: i32, %arg1: i32) -> (i32, i32, i32) {
    %c1_i32 = arith.constant 1 : i32
    %0 = arith.muli %arg1, %c1_i32 : i32
    %c1_i32_0 = arith.constant 1 : i32
    %1 = arith.subi %0, %c1_i32_0 : i32
    %c0_i32 = arith.constant 0 : i32
    %2 = arith.maxsi %1, %c0_i32 : i32
    %c0_i32_1 = arith.constant 0 : i32
    %c0_i32_2 = arith.constant 0 : i32
    return %arg0, %2, %c0_i32_1 : i32, i32, i32
  }
  func.func @transform_2(%arg0: i32, %arg1: i32) -> (i32, i32, i32) {
    %c1_i32 = arith.constant 1 : i32
    %0 = arith.addi %arg1, %c1_i32 : i32
    %c1_i32_0 = arith.constant 1 : i32
    %1 = arith.muli %0, %c1_i32_0 : i32
    %c3_i32 = arith.constant 3 : i32
    %2 = arith.minsi %1, %c3_i32 : i32
    %c0_i32 = arith.constant 0 : i32
    %c0_i32_1 = arith.constant 0 : i32
    return %arg0, %2, %c0_i32 : i32, i32, i32
  }
  func.func @transform_3(%arg0: i32, %arg1: i32) -> (i32, i32) {
    %c0_i32 = arith.constant 0 : i32
    %c0_i32_0 = arith.constant 0 : i32
    %c0_i32_1 = arith.constant 0 : i32
    return %c0_i32, %c0_i32_0 : i32, i32
  }
  func.func @transform_4(%arg0: i32, %arg1: i32) -> (i32, i32) {
    %c0_i32 = arith.constant 0 : i32
    %c0_i32_0 = arith.constant 0 : i32
    %c0_i32_1 = arith.constant 0 : i32
    return %c0_i32, %c0_i32_0 : i32, i32
  }
  func.func @transform_5(%arg0: i32, %arg1: i32) -> (i32, i32) {
    %c0_i32 = arith.constant 0 : i32
    %c0_i32_0 = arith.constant 0 : i32
    %c0_i32_1 = arith.constant 0 : i32
    return %c0_i32, %c0_i32_0 : i32, i32
  }
  func.func @transform_6(%arg0: i32, %arg1: i32) -> (i32, i32) {
    %c0_i32 = arith.constant 0 : i32
    %c0_i32_0 = arith.constant 0 : i32
    %c0_i32_1 = arith.constant 0 : i32
    return %c0_i32, %c0_i32_0 : i32, i32
  }
  func.func @transform_7(%arg0: i32, %arg1: i32) -> (i32, i32) {
    %c0_i32 = arith.constant 0 : i32
    %c0_i32_0 = arith.constant 0 : i32
    %c0_i32_1 = arith.constant 0 : i32
    return %c0_i32, %c0_i32_0 : i32, i32
  }
  func.func @transform_8(%arg0: i32, %arg1: i32) -> (i32, i32, i32) {
    %c0_i32 = arith.constant 0 : i32
    %c0_i32_0 = arith.constant 0 : i32
    return %arg0, %arg1, %c0_i32 : i32, i32, i32
  }
}

</mosaic_0001>

<llo_original>
// kernel: tpu_custom_call.1
$region0: #{tpu_custom_call.1}
  #allocation0 [shape = 'u32[]', space=smem, size = 0x4, offset = 0x4, fixed_abs, tag = 'smem constant byte address 0x4 - core index']
  #allocation1 [shape = 'u32[144,128]{1,0:T(1,128)}', space=vmem, size = 0x12000, scoped, tag = 'internal scratch']
  %s0 = inlined_call_operand.hbm [shape: f32[2,64,128], index: 0, kind: input, shape index: {}]
  %s1 = inlined_call_operand.hbm [shape: f32[2,64,128], index: 1, kind: input, shape index: {}]
  %s2 = inlined_call_operand.hbm [shape: f32[2,64,128], index: 2, kind: input, shape index: {}]
  %s3 = inlined_call_operand.vmem [shape: bf16[16,16], index: 3, kind: input, shape index: {}]
  %s4 = inlined_call_operand.hbm [shape: bf16[16,16], index: 4, kind: input, shape index: {}]
  %s5 = inlined_call_operand.vmem [shape: bf16[16,16], index: 5, kind: input, shape index: {}]
  %s6 = inlined_call_operand.hbm [shape: bf16[128,128], index: 6, kind: input, shape index: {}]
  %s7 = inlined_call_operand.vmem [shape: f32[1,128], index: 7, kind: input, shape index: {}]
  %s8 = inlined_call_operand.hbm [shape: f32[2,64,128], index: 8, kind: output, shape index: {}]
  %s9 = sld [smem:[#allocation0]]
  $region85: #{tpu_custom_call.1} parent=0
    _
  %s11 = ssub.s32 1, %s9
  %s12 = scalar_select 0, %s11, %s9
  $region1: #{tpu_custom_call.1} parent=0
    #allocation2 [shape = 'u8[16384]{0}', space=vmem, size = 0x4000, scoped, tag = 'input window, operand 0']
    #allocation3 [shape = 's32[2]{0}', space=sflag, size = 0x8, scoped, tag = 'scoped memory for tpu_custom_call.1']
    #allocation4 [shape = 's32[2]{0}', space=sflag, size = 0x8, scoped, tag = 'scoped memory for tpu_custom_call.1']
    #allocation5 [shape = 'u8[16384]{0}', space=vmem, size = 0x4000, scoped, tag = 'input window, operand 1']
    #allocation6 [shape = 's32[2]{0}', space=sflag, size = 0x8, scoped, tag = 'scoped memory for tpu_custom_call.1']
    #allocation7 [shape = 'u8[16384]{0}', space=vmem, size = 0x4000, scoped, tag = 'input window, operand 2']
    #allocation8 [shape = 'u8[4096]{0}', space=vmem, size = 0x1000, scoped, tag = 'input window, operand 4, single buffered']
    #allocation9 [shape = 's32[1]{0}', space=sflag, size = 0x4, scoped, tag = 'scoped memory for tpu_custom_call.1']
    #allocation10 [shape = 'u8[32768]{0}', space=vmem, size = 0x8000, scoped, tag = 'input window, operand 6, single buffered']
    #allocation11 [shape = 'u8[16384]{0}', space=vmem, size = 0x4000, scoped, tag = 'output window, operand 0']
    %13 = vsyncpa [#allocation3], 0
    %s14 = scalar_lea.sflag [#allocation3], 1
    %15 = vsyncpa %s14, 0
    %16 = vsyncpa [#allocation6], 0
    %s17 = scalar_lea.sflag [#allocation6], 1
    %18 = vsyncpa %s17, 0
    %19 = vsyncpa [#allocation9], 0
    %20 = vsyncpa [#allocation4], 0
    %s21 = scalar_lea.sflag [#allocation4], 1
    %22 = vsyncpa %s21, 0
    loop: start=0, step=1, limit=10
    $region2: #{tpu_custom_call.1} parent=1 // loop_pre_header
      _
    $region3: #{tpu_custom_call.1} parent=1 // loop_header
      %s24 = sphi 0, %s28
      %p25 = scmp.ge.s32.totalorder %s24, 10
      %s31 = sphi 0, %s43
      %s32 = sphi 0, %s39
      %s33 = sphi 0, %s31
      %s34 = sphi 0, %s32
      %s35 = sphi 0, %s33
      %s36 = sphi 0, %s34
      %s48 = sphi 0, %s50
      %s51 = sphi 0, %s48
      %s52 = sphi 0, %s51
      %s68 = sphi 0, %s52
      %s82 = sphi 0, %s84
      %s85 = sphi 0, %s82
      %s86 = sphi 0, %s85
      %s102 = sphi 0, %s86
      %s116 = sphi 0, %s118
      %s119 = sphi 0, %s116
      %s120 = sphi 0, %s119
      %s136 = sphi 0, %s120
      %s140 = sphi 0, %s140
      %s142 = sphi 0, %s140
      %s143 = sphi 0, %s142
      %s157 = sphi 0, %s143
      %s161 = sphi 0, %s161
      %s163 = sphi 0, %s161
      %s164 = sphi 0, %s163
      %s178 = sphi 0, %s164
      %s182 = sphi 0, %s182
      %s184 = sphi 0, %s182
      %s185 = sphi 0, %s184
      %s199 = sphi 0, %s185
      %s203 = sphi 0, %s203
      %s205 = sphi 0, %s203
      %s206 = sphi 0, %s205
      %s220 = sphi 0, %s206
      %s224 = sphi 0, %s224
      %s226 = sphi 0, %s224
      %s227 = sphi 0, %s226
      %s241 = sphi 0, %s227
      %s249 = sphi 0, %s251
      %s252 = sphi 0, %s249
      %s253 = sphi 0, %s252
      %s269 = sphi 0, %s253
    $region4: #{tpu_custom_call.1} parent=1 // loop_header_branch
      %27 = sbr.rel (%p25) target = $region8
    $region5: #{tpu_custom_call.1} parent=1 // loop_body
      %s29 = ssub.s32 %s24, 1
      %s30 = ssub.s32 %s24, 2
      %s37 = sadd.s32 1, %s32
      %p38 = scmp.ge.s32.totalorder %s37, 4
      %s39 = scalar_select %p38, 0, %s37
      %s40 = sadd.s32 1, %s31
      %s41 = scalar_select %p38, %s40, %s31
      %p42 = scmp.ge.s32.totalorder %s41, 2
      %s43 = scalar_select %p42, 0, %s41
      %s44 = ssub.s32 %s31, %s43
      %s45 = ssub.s32 %s32, %s39
      %s46 = sor.u32 %s44, %s45
      %p47 = scmp.eq.s32.totalorder %s46, 0
      %s49 = sadd.s32 %s48, 1
      %s50 = scalar_select %p47, %s48, %s49
      %p53 = pneg %p47
      %p54 = scmp.eq.s32.totalorder %s24, 7
      %p55 = por %p53, %p54
      %p56 = scmp.ne.s32.totalorder %s48, %s51
      %p57 = scmp.eq.s32.totalorder %s24, 0
      %p58 = por %p56, %p57
      %p59 = scmp.ne.s32.totalorder %s48, %s51
      %p60 = scmp.eq.s32.totalorder %s29, 7
      %p61 = por %p59, %p60
      %p62 = scmp.ne.s32.totalorder %s51, %s52
      %p63 = scmp.eq.s32.totalorder %s29, 0
      %p64 = por %p62, %p63
      %p65 = scmp.ne.s32.totalorder %s51, %s52
      %p66 = scmp.eq.s32.totalorder %s30, 7
      %p67 = por %p65, %p66
      %p69 = scmp.ne.s32.totalorder %s52, %s68
      %p70 = scmp.eq.s32.totalorder %s30, 0
      %p71 = por %p69, %p70
      %s72 = ssub.s32 %s32, 1
      %p73 = scmp.gt.s32.totalorder %s72, 0
      %s74 = scalar_select %p73, %s72, 0
      %s75 = ssub.s32 %s39, 1
      %p76 = scmp.gt.s32.totalorder %s75, 0
      %s77 = scalar_select %p76, %s75, 0
      %s78 = ssub.s32 %s31, %s43
      %s79 = ssub.s32 %s74, %s77
      %s80 = sor.u32 %s78, %s79
      %p81 = scmp.eq.s32.totalorder %s80, 0
      %s83 = sadd.s32 %s82, 1
      %s84 = scalar_select %p81, %s82, %s83
      %p87 = pneg %p81
      %p88 = scmp.eq.s32.totalorder %s24, 7
      %p89 = por %p87, %p88
      %p90 = scmp.ne.s32.totalorder %s82, %s85
      %p91 = scmp.eq.s32.totalorder %s24, 0
      %p92 = por %p90, %p91
      %p93 = scmp.ne.s32.totalorder %s82, %s85
      %p94 = scmp.eq.s32.totalorder %s29, 7
      %p95 = por %p93, %p94
      %p96 = scmp.ne.s32.totalorder %s85, %s86
      %p97 = scmp.eq.s32.totalorder %s29, 0
      %p98 = por %p96, %p97
      %p99 = scmp.ne.s32.totalorder %s85, %s86
      %p100 = scmp.eq.s32.totalorder %s30, 7
      %p101 = por %p99, %p100
      %p103 = scmp.ne.s32.totalorder %s86, %s102
      %p104 = scmp.eq.s32.totalorder %s30, 0
      %p105 = por %p103, %p104
      %s106 = sadd.s32 %s32, 1
      %p107 = scmp.lt.s32.totalorder %s106, 3
      %s108 = scalar_select %p107, %s106, 3
      %s109 = sadd.s32 %s39, 1
      %p110 = scmp.lt.s32.totalorder %s109, 3
      %s111 = scalar_select %p110, %s109, 3
      %s112 = ssub.s32 %s31, %s43
      %s113 = ssub.s32 %s108, %s111
      %s114 = sor.u32 %s112, %s113
      %p115 = scmp.eq.s32.totalorder %s114, 0
      %s117 = sadd.s32 %s116, 1
      %s118 = scalar_select %p115, %s116, %s117
      %p121 = pneg %p115
      %p122 = scmp.eq.s32.totalorder %s24, 7
      %p123 = por %p121, %p122
      %p124 = scmp.ne.s32.totalorder %s116, %s119
      %p125 = scmp.eq.s32.totalorder %s24, 0
      %p126 = por %p124, %p125
      %p127 = scmp.ne.s32.totalorder %s116, %s119
      %p128 = scmp.eq.s32.totalorder %s29, 7
      %p129 = por %p127, %p128
      %p130 = scmp.ne.s32.totalorder %s119, %s120
      %p131 = scmp.eq.s32.totalorder %s29, 0
      %p132 = por %p130, %p131
      %p133 = scmp.ne.s32.totalorder %s119, %s120
      %p134 = scmp.eq.s32.totalorder %s30, 7
      %p135 = por %p133, %p134
      %p137 = scmp.ne.s32.totalorder %s120, %s136
      %p138 = scmp.eq.s32.totalorder %s30, 0
      %p139 = por %p137, %p138
      %s141 = sadd.s32 %s140, 1
      %p144 = scmp.eq.s32.totalorder %s24, 7
      %p145 = scmp.ne.s32.totalorder %s140, %s142
      %p146 = scmp.eq.s32.totalorder %s24, 0
      %p147 = por %p145, %p146
      %p148 = scmp.ne.s32.totalorder %s140, %s142
      %p149 = scmp.eq.s32.totalorder %s29, 7
      %p150 = por %p148, %p149
      %p151 = scmp.ne.s32.totalorder %s142, %s143
      %p152 = scmp.eq.s32.totalorder %s29, 0
      %p153 = por %p151, %p152
      %p154 = scmp.ne.s32.totalorder %s142, %s143
      %p155 = scmp.eq.s32.totalorder %s30, 7
      %p156 = por %p154, %p155
      %p158 = scmp.ne.s32.totalorder %s143, %s157
      %p159 = scmp.eq.s32.totalorder %s30, 0
      %p160 = por %p158, %p159
      %s162 = sadd.s32 %s161, 1
      %p165 = scmp.eq.s32.totalorder %s24, 7
      %p166 = scmp.ne.s32.totalorder %s161, %s163
      %p167 = scmp.eq.s32.totalorder %s24, 0
      %p168 = por %p166, %p167
      %p169 = scmp.ne.s32.totalorder %s161, %s163
      %p170 = scmp.eq.s32.totalorder %s29, 7
      %p171 = por %p169, %p170
      %p172 = scmp.ne.s32.totalorder %s163, %s164
      %p173 = scmp.eq.s32.totalorder %s29, 0
      %p174 = por %p172, %p173
      %p175 = scmp.ne.s32.totalorder %s163, %s164
      %p176 = scmp.eq.s32.totalorder %s30, 7
      %p177 = por %p175, %p176
      %p179 = scmp.ne.s32.totalorder %s164, %s178
      %p180 = scmp.eq.s32.totalorder %s30, 0
      %p181 = por %p179, %p180
      %s183 = sadd.s32 %s182, 1
      %p186 = scmp.eq.s32.totalorder %s24, 7
      %p187 = scmp.ne.s32.totalorder %s182, %s184
      %p188 = scmp.eq.s32.totalorder %s24, 0
      %p189 = por %p187, %p188
      %p190 = scmp.ne.s32.totalorder %s182, %s184
      %p191 = scmp.eq.s32.totalorder %s29, 7
      %p192 = por %p190, %p191
      %p193 = scmp.ne.s32.totalorder %s184, %s185
      %p194 = scmp.eq.s32.totalorder %s29, 0
      %p195 = por %p193, %p194
      %p196 = scmp.ne.s32.totalorder %s184, %s185
      %p197 = scmp.eq.s32.totalorder %s30, 7
      %p198 = por %p196, %p197
      %p200 = scmp.ne.s32.totalorder %s185, %s199
      %p201 = scmp.eq.s32.totalorder %s30, 0
      %p202 = por %p200, %p201
      %s204 = sadd.s32 %s203, 1
      %p207 = scmp.eq.s32.totalorder %s24, 7
      %p208 = scmp.ne.s32.totalorder %s203, %s205
      %p209 = scmp.eq.s32.totalorder %s24, 0
      %p210 = por %p208, %p209
      %p211 = scmp.ne.s32.totalorder %s203, %s205
      %p212 = scmp.eq.s32.totalorder %s29, 7
      %p213 = por %p211, %p212
      %p214 = scmp.ne.s32.totalorder %s205, %s206
      %p215 = scmp.eq.s32.totalorder %s29, 0
      %p216 = por %p214, %p215
      %p217 = scmp.ne.s32.totalorder %s205, %s206
      %p218 = scmp.eq.s32.totalorder %s30, 7
      %p219 = por %p217, %p218
      %p221 = scmp.ne.s32.totalorder %s206, %s220
      %p222 = scmp.eq.s32.totalorder %s30, 0
      %p223 = por %p221, %p222
      %s225 = sadd.s32 %s224, 1
      %p228 = scmp.eq.s32.totalorder %s24, 7
      %p229 = scmp.ne.s32.totalorder %s224, %s226
      %p230 = scmp.eq.s32.totalorder %s24, 0
      %p231 = por %p229, %p230
      %p232 = scmp.ne.s32.totalorder %s224, %s226
      %p233 = scmp.eq.s32.totalorder %s29, 7
      %p234 = por %p232, %p233
      %p235 = scmp.ne.s32.totalorder %s226, %s227
      %p236 = scmp.eq.s32.totalorder %s29, 0
      %p237 = por %p235, %p236
      %p238 = scmp.ne.s32.totalorder %s226, %s227
      %p239 = scmp.eq.s32.totalorder %s30, 7
      %p240 = por %p238, %p239
      %p242 = scmp.ne.s32.totalorder %s227, %s241
      %p243 = scmp.eq.s32.totalorder %s30, 0
      %p244 = por %p242, %p243
      %s245 = ssub.s32 %s31, %s43
      %s246 = ssub.s32 %s32, %s39
      %s247 = sor.u32 %s245, %s246
      %p248 = scmp.eq.s32.totalorder %s247, 0
      %s250 = sadd.s32 %s249, 1
      %s251 = scalar_select %p248, %s249, %s250
      %p254 = pneg %p248
      %p255 = scmp.eq.s32.totalorder %s24, 7
      %p256 = por %p254, %p255
      %p257 = scmp.ne.s32.totalorder %s249, %s252
      %p258 = scmp.eq.s32.totalorder %s24, 0
      %p259 = por %p257, %p258
      %p260 = scmp.ne.s32.totalorder %s249, %s252
      %p261 = scmp.eq.s32.totalorder %s29, 7
      %p262 = por %p260, %p261
      %p263 = scmp.ne.s32.totalorder %s252, %s253
      %p264 = scmp.eq.s32.totalorder %s29, 0
      %p265 = por %p263, %p264
      %p266 = scmp.ne.s32.totalorder %s252, %s253
      %p267 = scmp.eq.s32.totalorder %s30, 7
      %p268 = por %p266, %p267
      %p270 = scmp.ne.s32.totalorder %s253, %s269
      %p271 = scmp.eq.s32.totalorder %s30, 0
      %p272 = por %p270, %p271
      %p273 = scmp.le.s32.totalorder 1, %s24
      %p274 = scmp.lt.s32.totalorder %s24, 9
      %p275 = pnand %p273, %p274
      %p276 = pneg %p275
      // Predicated region
      $region9: #{tpu_custom_call.1} parent=5 // pred_check
        _
      $region10: #{tpu_custom_call.1} parent=5 // pred_check_branch
        %278 = sbr.rel (%p275) target = $region12
      $region11: #{tpu_custom_call.1} parent=5 // pred_region
        %s279 = ssub.s32 %s24, 1
        // Predicated region
        $region13: #{tpu_custom_call.1} parent=11 // pred_check
          %p280 = pneg %p153
        $region14: #{tpu_custom_call.1} parent=11 // pred_check_branch
          %282 = sbr.rel (%p280) target = $region16
        $region15: #{tpu_custom_call.1} parent=11 // pred_region
          _
        $region16: #{tpu_custom_call.1} parent=11 // pred_fallthru
          _
        // Predicated region
        $region17: #{tpu_custom_call.1} parent=11 // pred_check
          %p283 = pneg %p174
        $region18: #{tpu_custom_call.1} parent=11 // pred_check_branch
          %285 = sbr.rel (%p283) target = $region20
        $region19: #{tpu_custom_call.1} parent=11 // pred_region
          %s287 = ssub.s32 128, 128
          %288 = vsyncadd [#allocation9], %s287
          %s289 = sshll.u32 [#allocation8], 4
          %s290 = int_to_ptr.vmem [resolvable:$true] %s289
          %295 = dma.hbm_to_vmem [thread:$0]  %s4, 128, %s290, [#allocation9], 64, 64, 4
        $region20: #{tpu_custom_call.1} parent=11 // pred_fallthru
          _
        // Predicated region
        $region21: #{tpu_custom_call.1} parent=11 // pred_check
          %p296 = pneg %p195
        $region22: #{tpu_custom_call.1} parent=11 // pred_check_branch
          %298 = sbr.rel (%p296) target = $region24
        $region23: #{tpu_custom_call.1} parent=11 // pred_region
          _
        $region24: #{tpu_custom_call.1} parent=11 // pred_fallthru
          _
        // Predicated region
        $region25: #{tpu_custom_call.1} parent=11 // pred_check
          %p299 = pneg %p216
        $region26: #{tpu_custom_call.1} parent=11 // pred_check_branch
          %301 = sbr.rel (%p299) target = $region28
        $region27: #{tpu_custom_call.1} parent=11 // pred_region
          %s303 = ssub.s32 1024, 1024
          %304 = vsyncadd [#allocation9], %s303
          %s305 = sshll.u32 [#allocation10], 4
          %s306 = int_to_ptr.vmem [resolvable:$true] %s305
          %311 = dma.hbm_to_vmem [thread:$0]  %s6, 1024, %s306, [#allocation9], 64, 64, 4
        $region28: #{tpu_custom_call.1} parent=11 // pred_fallthru
          _
        // Predicated region
        $region29: #{tpu_custom_call.1} parent=11 // pred_check
          %p312 = pneg %p237
        $region30: #{tpu_custom_call.1} parent=11 // pred_check_branch
          %314 = sbr.rel (%p312) target = $region32
        $region31: #{tpu_custom_call.1} parent=11 // pred_region
          _
        $region32: #{tpu_custom_call.1} parent=11 // pred_fallthru
          _
      $region12: #{tpu_custom_call.1} parent=5 // pred_fallthru
        _
      %p315 = scmp.lt.s32.totalorder %s24, 8
      // Predicated region
      $region33: #{tpu_custom_call.1} parent=5 // pred_check
        %p316 = pneg %p315
      $region34: #{tpu_custom_call.1} parent=5 // pred_check_branch
        %318 = sbr.rel (%p316) target = $region36
      $region35: #{tpu_custom_call.1} parent=5 // pred_region
        // Predicated region
        $region37: #{tpu_custom_call.1} parent=35 // pred_check
          %p319 = pneg %p58
        $region38: #{tpu_custom_call.1} parent=35 // pred_check_branch
          %321 = sbr.rel (%p319) target = $region40
        $region39: #{tpu_custom_call.1} parent=35 // pred_region
          %s322 = sand.u32 %s48, 1
          %s323 = scalar_lea.sflag [#allocation3], %s322
          %s324 = sand.u32 %s48, 1
          %s325 = smul.addr %s324, 16
          %s326 = scalar_lea.vmem [#allocation2], %s325
          %s327 = smul.u32 2, %s32
          %s329 = ssub.s32 256, 256
          %330 = vsyncadd %s323, %s329
          %s331 = smul.addr %s31, 8
          %s332 = sadd.s32 %s327, %s331
          %s333 = smul.addr %s332, 128
          %s334 = scalar_lea.hbm %s0, %s333
          %s335 = sshll.u32 %s326, 4
          %s336 = int_to_ptr.vmem [resolvable:$true] %s335
          %341 = dma.hbm_to_vmem [thread:$0]  %s334, 256, %s336, %s323, 128, 128, 8
        $region40: #{tpu_custom_call.1} parent=35 // pred_fallthru
          _
        // Predicated region
        $region41: #{tpu_custom_call.1} parent=35 // pred_check
          %p342 = pneg %p92
        $region42: #{tpu_custom_call.1} parent=35 // pred_check_branch
          %344 = sbr.rel (%p342) target = $region44
        $region43: #{tpu_custom_call.1} parent=35 // pred_region
          %s345 = sand.u32 %s24, 1
          %s346 = scalar_lea.sflag [#allocation6], %s345
          %s347 = sand.u32 %s82, 1
          %s348 = smul.addr %s347, 16
          %s349 = scalar_lea.vmem [#allocation5], %s348
          %s350 = ssub.s32 %s32, 1
          %p351 = scmp.gt.s32.totalorder %s350, 0
          %s352 = scalar_select %p351, %s350, 0
          %s353 = smul.u32 2, %s352
          %s355 = ssub.s32 256, 256
          %356 = vsyncadd %s346, %s355
          %s357 = smul.addr %s31, 8
          %s358 = sadd.s32 %s353, %s357
          %s359 = smul.addr %s358, 128
          %s360 = scalar_lea.hbm %s1, %s359
          %s361 = sshll.u32 %s349, 4
          %s362 = int_to_ptr.vmem [resolvable:$true] %s361
          %367 = dma.hbm_to_vmem [thread:$0]  %s360, 256, %s362, %s346, 128, 128, 8
        $region44: #{tpu_custom_call.1} parent=35 // pred_fallthru
          _
        // Predicated region
        $region45: #{tpu_custom_call.1} parent=35 // pred_check
          %p368 = pneg %p126
        $region46: #{tpu_custom_call.1} parent=35 // pred_check_branch
          %370 = sbr.rel (%p368) target = $region48
        $region47: #{tpu_custom_call.1} parent=35 // pred_region
          %s371 = sand.u32 %s24, 1
          %s372 = scalar_lea.sflag [#allocation6], %s371
          %s373 = sand.u32 %s116, 1
          %s374 = smul.addr %s373, 16
          %s375 = scalar_lea.vmem [#allocation7], %s374
          %s376 = sadd.s32 %s32, 1
          %p377 = scmp.lt.s32.totalorder %s376, 3
          %s378 = scalar_select %p377, %s376, 3
          %s379 = smul.u32 2, %s378
          %s381 = ssub.s32 256, 256
          %382 = vsyncadd %s372, %s381
          %s383 = smul.addr %s31, 8
          %s384 = sadd.s32 %s379, %s383
          %s385 = smul.addr %s384, 128
          %s386 = scalar_lea.hbm %s2, %s385
          %s387 = sshll.u32 %s375, 4
          %s388 = int_to_ptr.vmem [resolvable:$true] %s387
          %393 = dma.hbm_to_vmem [thread:$0]  %s386, 256, %s388, %s372, 128, 128, 8
        $region48: #{tpu_custom_call.1} parent=35 // pred_fallthru
          _
      $region36: #{tpu_custom_call.1} parent=5 // pred_fallthru
        _
      %p394 = scmp.le.s32.totalorder 1, %s24
      %p395 = scmp.lt.s32.totalorder %s24, 9
      %p396 = pnand %p394, %p395
      %p397 = pneg %p396
      // Predicated region
      $region49: #{tpu_custom_call.1} parent=5 // pred_check
        _
      $region50: #{tpu_custom_call.1} parent=5 // pred_check_branch
        %399 = sbr.rel (%p396) target = $region52
      $region51: #{tpu_custom_call.1} parent=5 // pred_region
        %s400 = ssub.s32 %s24, 1
        %s401 = sand.u32 %s51, 1
        %s402 = scalar_lea.sflag [#allocation3], %s401
        %s403 = sand.u32 %s51, 1
        %s404 = smul.addr %s403, 16
        %s405 = scalar_lea.vmem [#allocation2], %s404
        // Predicated region
        $region53: #{tpu_custom_call.1} parent=51 // pred_check
          %p406 = pneg %p64
        $region54: #{tpu_custom_call.1} parent=51 // pred_check_branch
          %408 = sbr.rel (%p406) target = $region56
        $region55: #{tpu_custom_call.1} parent=51 // pred_region
          %409 = dma.done %s402, 256
        $region56: #{tpu_custom_call.1} parent=51 // pred_fallthru
          _
        %s410 = sand.u32 %s29, 1
        %s411 = scalar_lea.sflag [#allocation6], %s410
        %s412 = sand.u32 %s85, 1
        %s413 = smul.addr %s412, 16
        %s414 = scalar_lea.vmem [#allocation5], %s413
        // Predicated region
        $region57: #{tpu_custom_call.1} parent=51 // pred_check
          %p415 = pneg %p98
        $region58: #{tpu_custom_call.1} parent=51 // pred_check_branch
          %417 = sbr.rel (%p415) target = $region60
        $region59: #{tpu_custom_call.1} parent=51 // pred_region
          %418 = dma.done %s411, 256
        $region60: #{tpu_custom_call.1} parent=51 // pred_fallthru
          _
        %s419 = sand.u32 %s29, 1
        %s420 = scalar_lea.sflag [#allocation6], %s419
        %s421 = sand.u32 %s119, 1
        %s422 = smul.addr %s421, 16
        %s423 = scalar_lea.vmem [#allocation7], %s422
        // Predicated region
        $region61: #{tpu_custom_call.1} parent=51 // pred_check
          %p424 = pneg %p132
        $region62: #{tpu_custom_call.1} parent=51 // pred_check_branch
          %426 = sbr.rel (%p424) target = $region64
        $region63: #{tpu_custom_call.1} parent=51 // pred_region
          %427 = dma.done %s420, 256
        $region64: #{tpu_custom_call.1} parent=51 // pred_fallthru
          _
        // Predicated region
        $region65: #{tpu_custom_call.1} parent=51 // pred_check
          %p428 = pneg %p174
        $region66: #{tpu_custom_call.1} parent=51 // pred_check_branch
          %430 = sbr.rel (%p428) target = $region68
        $region67: #{tpu_custom_call.1} parent=51 // pred_region
          %431 = dma.done [#allocation9], 128
        $region68: #{tpu_custom_call.1} parent=51 // pred_fallthru
          _
        // Predicated region
        $region69: #{tpu_custom_call.1} parent=51 // pred_check
          %p432 = pneg %p216
        $region70: #{tpu_custom_call.1} parent=51 // pred_check_branch
          %434 = sbr.rel (%p432) target = $region72
        $region71: #{tpu_custom_call.1} parent=51 // pred_region
          %435 = dma.done [#allocation9], 1024
        $region72: #{tpu_custom_call.1} parent=51 // pred_fallthru
          _
        %s436 = sand.u32 %s51, 1
        %s437 = scalar_lea.sflag [#allocation3], %s436
        %s438 = sand.u32 %s51, 1
        %s439 = smul.addr %s438, 16
        %s440 = scalar_lea.vmem [#allocation2], %s439
        %p441 = pneg %p64
        %p442 = pneg %p61
        %s443 = sand.u32 %s29, 1
        %s444 = scalar_lea.sflag [#allocation6], %s443
        %s445 = sand.u32 %s85, 1
        %s446 = smul.addr %s445, 16
        %s447 = scalar_lea.vmem [#allocation5], %s446
        %p448 = pneg %p98
        %p449 = pneg %p95
        %s450 = sand.u32 %s29, 1
        %s451 = scalar_lea.sflag [#allocation6], %s450
        %s452 = sand.u32 %s119, 1
        %s453 = smul.addr %s452, 16
        %s454 = scalar_lea.vmem [#allocation7], %s453
        %p455 = pneg %p132
        %p456 = pneg %p129
        %p457 = pneg %p153
        %p458 = pneg %p150
        %p459 = pneg %p174
        %p460 = pneg %p171
        %p461 = pneg %p195
        %p462 = pneg %p192
        %p463 = pneg %p216
        %p464 = pneg %p213
        %p465 = pneg %p237
        %p466 = pneg %p234
        %p467 = pneg %p265
        %p468 = pneg %p262
        %s469 = sand.u32 %s252, 1
        %s470 = scalar_lea.sflag [#allocation4], %s469
        %s471 = sand.u32 %s252, 1
        %s472 = smul.addr %s471, 16
        %s473 = scalar_lea.vmem [#allocation11], %s472
        %s474 = smul.u32 2, %s34
        %s475 = ssub.s32 %s34, 1
        %p476 = scmp.gt.s32.totalorder %s475, 0
        %s477 = scalar_select %p476, %s475, 0
        %s478 = smul.u32 2, %s477
        %s479 = sadd.s32 %s34, 1
        %p480 = scmp.lt.s32.totalorder %s479, 3
        %s481 = scalar_select %p480, %s479, 3
        %s482 = smul.u32 2, %s481
        %s483 = smul.u32 2, %s34
        %v485 = vld [vmem:[%s405] sm:$0xff]
        %v486 = vld [vmem:[%s405 + $0x8] sm:$0xff]
        %v487 = vld [vmem:[%s414] sm:$0xff]
        %v488 = vld [vmem:[%s414 + $0x8] sm:$0xff]
        %p489 = scmp.gt.s32.totalorder %s34, 0
        %s490 = scalar_select %p489, 1, 0
        %s491 = scvt.s32.f32 %s490
        %v492 = vstv %s491
        %v493 = vmul.f32 %v487, %v492
        %v494 = vmul.f32 %v488, %v492
        %v495 = vpack.c.bf16 %v494, %v493
        %v496 = vld [vmem:[%s423] sm:$0xff]
        %v497 = vld [vmem:[%s423 + $0x8] sm:$0xff]
        %p498 = scmp.lt.s32.totalorder %s34, 3
        %s499 = scalar_select %p498, 1, 0
        %s500 = scvt.s32.f32 %s499
        %v501 = vstv %s500
        %v502 = vmul.f32 %v496, %v501
        %v503 = vmul.f32 %v497, %v501
        %v504 = vpack.c.bf16 %v503, %v502
        %v505 = vld [vmem:[%s3] sm:$0xf]
        %v506 = vld [vmem:[%s3 + $0x4] sm:$0xf]
        %v507 = vpack.c.bf16 %v486, %v485
        %v508 = vld [vmem:[#allocation8] sm:$0xf]
        %v509 = vld [vmem:[#allocation8 + $0x4] sm:$0xf]
        %v512 = vunpack.c.l.b16 %v508
        %v513 = vunpack.c.l.b16 %v509
        %v514 = vpack.c.b16 %v513, %v512
        %vm515 = vcmask 130048
        %v517 = vsel %vm515, %v514, 0
        %519 = vmatprep.subr.bf16.mxu0 0
        %520 = vmatpush1.bf16.msra.mxu0 %v495
        %521 = vmatprep.subr.bf16.mxu0 0
        %522 = vmatpush1.bf16.msra.mxu0 0
        %523 = vmatprep.subr.bf16.mxu0 0
        %524 = vmatpush1.bf16.msra.mxu0 0
        %525 = vmatprep.subr.bf16.mxu0 0
        %526 = vmatpush1.bf16.msra.mxu0 0
        %527 = vmatprep.subr.bf16.mxu0 0
        %528 = vmatpush1.bf16.msra.mxu0 0
        %529 = vmatprep.subr.bf16.mxu0 0
        %530 = vmatpush1.bf16.msra.mxu0 0
        %531 = vmatprep.subr.bf16.mxu0 0
        %532 = vmatpush1.bf16.msra.mxu0 0
        %533 = vmatprep.subr.bf16.mxu0 0
        %534 = vmatpush1.bf16.msra.mxu0 0
        %535 = vmatprep.subr.bf16.mxu0 0
        %536 = vmatpush1.bf16.msra.mxu0 0
        %537 = vmatprep.subr.bf16.mxu0 0
        %538 = vmatpush1.bf16.msra.mxu0 0
        %539 = vmatprep.subr.bf16.mxu0 0
        %540 = vmatpush1.bf16.msra.mxu0 0
        %541 = vmatprep.subr.bf16.mxu0 0
        %542 = vmatpush1.bf16.msra.mxu0 0
        %543 = vmatprep.subr.bf16.mxu0 0
        %544 = vmatpush1.bf16.msra.mxu0 0
        %545 = vmatprep.subr.bf16.mxu0 0
        %546 = vmatpush1.bf16.msra.mxu0 0
        %547 = vmatprep.subr.bf16.mxu0 0
        %548 = vmatpush1.bf16.msra.mxu0 0
        %549 = vmatprep.subr.bf16.mxu0 0
        %550 = vmatpush1.bf16.msra.mxu0 0
        %551 = vmatprep.mubr.bf16.mxu0 0
        %552 = vmatmul.mubr.bf16.gmra.mrb[0].mxu0 %v517
        %v553 = vpop.f32.mrb[0].mxu0
        %v554 = vadd.f32 0.0, %v553
        %v555 = vpop.f32.mrb[0].mxu0
        %v556 = vpop.f32.mrb[0].mxu0
        %v557 = vadd.f32 0.0, %v556
        %v558 = vpop.f32.mrb[0].mxu0
        %559 = vdwg.mxu0
        %v562 = vunpack.c.l.b16 %v505
        %v563 = vunpack.c.l.b16 %v506
        %v564 = vpack.c.b16 %v563, %v562
        %v566 = vsel %vm515, %v564, 0
        %568 = vmatprep.subr.bf16.mxu0 0
        %569 = vmatpush1.bf16.msra.mxu0 %v507
        %570 = vmatprep.subr.bf16.mxu0 0
        %571 = vmatpush1.bf16.msra.mxu0 0
        %572 = vmatprep.subr.bf16.mxu0 0
        %573 = vmatpush1.bf16.msra.mxu0 0
        %574 = vmatprep.subr.bf16.mxu0 0
        %575 = vmatpush1.bf16.msra.mxu0 0
        %576 = vmatprep.subr.bf16.mxu0 0
        %577 = vmatpush1.bf16.msra.mxu0 0
        %578 = vmatprep.subr.bf16.mxu0 0
        %579 = vmatpush1.bf16.msra.mxu0 0
        %580 = vmatprep.subr.bf16.mxu0 0
        %581 = vmatpush1.bf16.msra.mxu0 0
        %582 = vmatprep.subr.bf16.mxu0 0
        %583 = vmatpush1.bf16.msra.mxu0 0
        %584 = vmatprep.subr.bf16.mxu0 0
        %585 = vmatpush1.bf16.msra.mxu0 0
        %586 = vmatprep.subr.bf16.mxu0 0
        %587 = vmatpush1.bf16.msra.mxu0 0
        %588 = vmatprep.subr.bf16.mxu0 0
        %589 = vmatpush1.bf16.msra.mxu0 0
        %590 = vmatprep.subr.bf16.mxu0 0
        %591 = vmatpush1.bf16.msra.mxu0 0
        %592 = vmatprep.subr.bf16.mxu0 0
        %593 = vmatpush1.bf16.msra.mxu0 0
        %594 = vmatprep.subr.bf16.mxu0 0
        %595 = vmatpush1.bf16.msra.mxu0 0
        %596 = vmatprep.subr.bf16.mxu0 0
        %597 = vmatpush1.bf16.msra.mxu0 0
        %598 = vmatprep.subr.bf16.mxu0 0
        %599 = vmatpush1.bf16.msra.mxu0 0
        %600 = vmatprep.mubr.bf16.mxu0 0
        %601 = vmatmul.mubr.bf16.gmra.mrb[0].mxu0 %v566
        %v602 = vpop.f32.mrb[0].mxu0
        %v603 = vadd.f32 %v554, %v602
        %v604 = vpop.f32.mrb[0].mxu0
        %v605 = vpop.f32.mrb[0].mxu0
        %v606 = vadd.f32 %v557, %v605
        %v607 = vpop.f32.mrb[0].mxu0
        %608 = vdwg.mxu0
        %v609 = vld [vmem:[%s5] sm:$0xf]
        %v610 = vld [vmem:[%s5 + $0x4] sm:$0xf]
        %v613 = vunpack.c.l.b16 %v609
        %v614 = vunpack.c.l.b16 %v610
        %v615 = vpack.c.b16 %v614, %v613
        %v617 = vsel %vm515, %v615, 0
        %619 = vmatprep.subr.bf16.mxu0 0
        %620 = vmatpush1.bf16.msra.mxu0 %v504
        %621 = vmatprep.subr.bf16.mxu0 0
        %622 = vmatpush1.bf16.msra.mxu0 0
        %623 = vmatprep.subr.bf16.mxu0 0
        %624 = vmatpush1.bf16.msra.mxu0 0
        %625 = vmatprep.subr.bf16.mxu0 0
        %626 = vmatpush1.bf16.msra.mxu0 0
        %627 = vmatprep.subr.bf16.mxu0 0
        %628 = vmatpush1.bf16.msra.mxu0 0
        %629 = vmatprep.subr.bf16.mxu0 0
        %630 = vmatpush1.bf16.msra.mxu0 0
        %631 = vmatprep.subr.bf16.mxu0 0
        %632 = vmatpush1.bf16.msra.mxu0 0
        %633 = vmatprep.subr.bf16.mxu0 0
        %634 = vmatpush1.bf16.msra.mxu0 0
        %635 = vmatprep.subr.bf16.mxu0 0
        %636 = vmatpush1.bf16.msra.mxu0 0
        %637 = vmatprep.subr.bf16.mxu0 0
        %638 = vmatpush1.bf16.msra.mxu0 0
        %639 = vmatprep.subr.bf16.mxu0 0
        %640 = vmatpush1.bf16.msra.mxu0 0
        %641 = vmatprep.subr.bf16.mxu0 0
        %642 = vmatpush1.bf16.msra.mxu0 0
        %643 = vmatprep.subr.bf16.mxu0 0
        %644 = vmatpush1.bf16.msra.mxu0 0
        %645 = vmatprep.subr.bf16.mxu0 0
        %646 = vmatpush1.bf16.msra.mxu0 0
        %647 = vmatprep.subr.bf16.mxu0 0
        %648 = vmatpush1.bf16.msra.mxu0 0
        %649 = vmatprep.subr.bf16.mxu0 0
        %650 = vmatpush1.bf16.msra.mxu0 0
        %651 = vmatprep.mubr.bf16.mxu0 0
        %652 = vmatmul.mubr.bf16.gmra.mrb[0].mxu0 %v617
        %v653 = vpop.f32.mrb[0].mxu0
        %v654 = vadd.f32 0.0, %v653
        %v655 = vpop.f32.mrb[0].mxu0
        %v656 = vpop.f32.mrb[0].mxu0
        %v657 = vadd.f32 0.0, %v656
        %v658 = vpop.f32.mrb[0].mxu0
        %659 = vdwg.mxu0
        %v660 = vadd.f32 %v603, %v654
        %v661 = vadd.f32 %v606, %v657
        %v662 = vpack.c.bf16 %v661, %v660
        %v663 = vld [vmem:[#allocation10] sm:$0xf]
        %v664 = vld [vmem:[#allocation10 + $0x4] sm:$0xf]
        %v665 = vld [vmem:[#allocation10 + $0x8] sm:$0xf]
        %v666 = vld [vmem:[#allocation10 + $0xc] sm:$0xf]
        %v667 = vld [vmem:[#allocation10 + $0x10] sm:$0xf]
        %v668 = vld [vmem:[#allocation10 + $0x14] sm:$0xf]
        %v669 = vld [vmem:[#allocation10 + $0x18] sm:$0xf]
        %v670 = vld [vmem:[#allocation10 + $0x1c] sm:$0xf]
        %v671 = vld [vmem:[#allocation10 + $0x20] sm:$0xf]
        %v672 = vld [vmem:[#allocation10 + $0x24] sm:$0xf]
        %v673 = vld [vmem:[#allocation10 + $0x28] sm:$0xf]
        %v674 = vld [vmem:[#allocation10 + $0x2c] sm:$0xf]
        %v675 = vld [vmem:[#allocation10 + $0x30] sm:$0xf]
        %v676 = vld [vmem:[#allocation10 + $0x34] sm:$0xf]
        %v677 = vld [vmem:[#allocation10 + $0x38] sm:$0xf]
        %v678 = vld [vmem:[#allocation10 + $0x3c] sm:$0xf]
        %v695 = vunpack.c.l.b16 %v663
        %v696 = vunpack.c.l.b16 %v664
        %v697 = vunpack.c.l.b16 %v665
        %v698 = vunpack.c.l.b16 %v666
        %v699 = vunpack.c.l.b16 %v667
        %v700 = vunpack.c.l.b16 %v668
        %v701 = vunpack.c.l.b16 %v669
        %v702 = vunpack.c.l.b16 %v670
        %v703 = vunpack.c.l.b16 %v671
        %v704 = vunpack.c.l.b16 %v672
        %v705 = vunpack.c.l.b16 %v673
        %v706 = vunpack.c.l.b16 %v674
        %v707 = vunpack.c.l.b16 %v675
        %v708 = vunpack.c.l.b16 %v676
        %v709 = vunpack.c.l.b16 %v677
        %v710 = vunpack.c.l.b16 %v678
        %v711 = vpack.c.b16 %v696, %v695
        %v712 = vpack.c.b16 %v698, %v697
        %v713 = vpack.c.b16 %v700, %v699
        %v714 = vpack.c.b16 %v702, %v701
        %v715 = vpack.c.b16 %v704, %v703
        %v716 = vpack.c.b16 %v706, %v705
        %v717 = vpack.c.b16 %v708, %v707
        %v718 = vpack.c.b16 %v710, %v709
        %727 = vmatprep.subr.bf16.mxu0 0
        %728 = vmatpush1.bf16.msra.mxu0 %v711
        %729 = vmatprep.subr.bf16.mxu0 0
        %730 = vmatpush1.bf16.msra.mxu0 %v712
        %731 = vmatprep.subr.bf16.mxu0 0
        %732 = vmatpush1.bf16.msra.mxu0 %v713
        %733 = vmatprep.subr.bf16.mxu0 0
        %734 = vmatpush1.bf16.msra.mxu0 %v714
        %735 = vmatprep.subr.bf16.mxu0 0
        %736 = vmatpush1.bf16.msra.mxu0 %v715
        %737 = vmatprep.subr.bf16.mxu0 0
        %738 = vmatpush1.bf16.msra.mxu0 %v716
        %739 = vmatprep.subr.bf16.mxu0 0
        %740 = vmatpush1.bf16.msra.mxu0 %v717
        %741 = vmatprep.subr.bf16.mxu0 0
        %742 = vmatpush1.bf16.msra.mxu0 %v718
        %743 = vmatprep.subr.bf16.mxu0 0
        %744 = vmatpush1.bf16.msra.mxu0 0
        %745 = vmatprep.subr.bf16.mxu0 0
        %746 = vmatpush1.bf16.msra.mxu0 0
        %747 = vmatprep.subr.bf16.mxu0 0
        %748 = vmatpush1.bf16.msra.mxu0 0
        %749 = vmatprep.subr.bf16.mxu0 0
        %750 = vmatpush1.bf16.msra.mxu0 0
        %751 = vmatprep.subr.bf16.mxu0 0
        %752 = vmatpush1.bf16.msra.mxu0 0
        %753 = vmatprep.subr.bf16.mxu0 0
        %754 = vmatpush1.bf16.msra.mxu0 0
        %755 = vmatprep.subr.bf16.mxu0 0
        %756 = vmatpush1.bf16.msra.mxu0 0
        %757 = vmatprep.subr.bf16.mxu0 0
        %758 = vmatpush1.bf16.msra.mxu0 0
        %759 = vmatprep.mubr.bf16.mxu0 0
        %760 = vmatmul.mubr.bf16.gmra.mrb[0].mxu0 %v662
        %v761 = vpop.f32.mrb[0].mxu0
        %v762 = vadd.f32 0.0, %v761
        %v763 = vpop.f32.mrb[0].mxu0
        %v764 = vpop.f32.mrb[0].mxu0
        %v765 = vadd.f32 0.0, %v764
        %v766 = vpop.f32.mrb[0].mxu0
        %767 = vdwg.mxu0
        %v768 = vadd.f32 %v485, %v762
        %v769 = vadd.f32 %v486, %v765
        %v770 = vld [vmem:[%s7] sm:$0x1]
        %v772 = vlaneseq
        %v773 = vshrl.u32 %v772, 7
        %v774 = vsub.s32 0, %v773
        %v775 = vrot.slane %v770, %v774
        %v777 = vadd.f32 %v768, %v775
        %v778 = vadd.f32 %v769, %v775
        %779 = vst [vmem:[%s473] sm:$0xff] %v777
        %780 = vst [vmem:[%s473 + $0x8] sm:$0xff] %v778
        %s781 = sand.u32 %s252, 1
        %s782 = scalar_lea.sflag [#allocation4], %s781
        %s783 = sand.u32 %s252, 1
        %s784 = smul.addr %s783, 16
        %s785 = scalar_lea.vmem [#allocation11], %s784
        // Predicated region
        $region73: #{tpu_custom_call.1} parent=51 // pred_check
          %p786 = pneg %p262
        $region74: #{tpu_custom_call.1} parent=51 // pred_check_branch
          %788 = sbr.rel (%p786) target = $region76
        $region75: #{tpu_custom_call.1} parent=51 // pred_region
          %s789 = smul.u32 2, %s34
          %s791 = ssub.s32 256, 256
          %792 = vsyncadd %s782, %s791
          %s793 = smul.addr %s33, 8
          %s794 = sadd.s32 %s789, %s793
          %s795 = smul.addr %s794, 128
          %s796 = scalar_lea.hbm %s8, %s795
          %s797 = sshll.u32 %s785, 4
          %s798 = int_to_ptr.vmem [resolvable:$true] %s797
          %803 = dma.vmem_to_hbm [thread:$0]  %s798, 256, %s796, %s782, 128, 128, 8
        $region76: #{tpu_custom_call.1} parent=51 // pred_fallthru
          _
      $region52: #{tpu_custom_call.1} parent=5 // pred_fallthru
        _
      %p804 = scmp.le.s32.totalorder 2, %s24
      // Predicated region
      $region77: #{tpu_custom_call.1} parent=5 // pred_check
        %p805 = pneg %p804
      $region78: #{tpu_custom_call.1} parent=5 // pred_check_branch
        %807 = sbr.rel (%p805) target = $region80
      $region79: #{tpu_custom_call.1} parent=5 // pred_region
        %s808 = ssub.s32 %s24, 2
        // Predicated region
        $region81: #{tpu_custom_call.1} parent=79 // pred_check
          %p809 = pneg %p268
        $region82: #{tpu_custom_call.1} parent=79 // pred_check_branch
          %811 = sbr.rel (%p809) target = $region84
        $region83: #{tpu_custom_call.1} parent=79 // pred_region
          %s812 = sand.u32 %s253, 1
          %s813 = scalar_lea.sflag [#allocation4], %s812
          %s814 = sand.u32 %s253, 1
          %s815 = smul.addr %s814, 16
          %s816 = scalar_lea.vmem [#allocation11], %s815
          %817 = dma.done %s813, 256
        $region84: #{tpu_custom_call.1} parent=79 // pred_fallthru
          _
      $region80: #{tpu_custom_call.1} parent=5 // pred_fallthru
        _
    $region6: #{tpu_custom_call.1} parent=1 // loop_footer
      %s28 = sadd.s32 1, %s24
    $region7: #{tpu_custom_call.1} parent=1 // loop_footer_branch
      %23 = sbr.rel target = $region3
    $region8: #{tpu_custom_call.1} parent=1 // loop_exit
      _
    %818 = vsyncpa [#allocation3], 1
    %s819 = scalar_lea.sflag [#allocation3], 1
    %820 = vsyncpa %s819, 1
    %821 = vsyncpa [#allocation6], 1
    %s822 = scalar_lea.sflag [#allocation6], 1
    %823 = vsyncpa %s822, 1
    %824 = vsyncpa [#allocation9], 1
    %825 = vsyncpa [#allocation4], 1
    %s826 = scalar_lea.sflag [#allocation4], 1
    %827 = vsyncpa %s826, 1

// kernel: tpu_custom_call.1
$region0: #{tpu_custom_call.1}
  #allocation0 [shape = 'u32[]', space=smem, size = 0x4, offset = 0x4, fixed_abs, tag = 'smem constant byte address 0x4 - core index']
  #allocation1 [shape = 'u32[144,128]{1,0:T(1,128)}', space=vmem, size = 0x12000, scoped, tag = 'internal scratch']
  %s0 = inlined_call_operand.hbm [shape: f32[2,64,128], index: 0, kind: input, shape index: {}]
  %s1 = inlined_call_operand.hbm [shape: f32[2,64,128], index: 1, kind: input, shape index: {}]
  %s2 = inlined_call_operand.hbm [shape: f32[2,64,128], index: 2, kind: input, shape index: {}]
  %s3 = inlined_call_operand.vmem [shape: bf16[16,16], index: 3, kind: input, shape index: {}]
  %s4 = inlined_call_operand.hbm [shape: bf16[16,16], index: 4, kind: input, shape index: {}]
  %s5 = inlined_call_operand.vmem [shape: bf16[16,16], index: 5, kind: input, shape index: {}]
  %s6 = inlined_call_operand.hbm [shape: bf16[128,128], index: 6, kind: input, shape index: {}]
  %s7 = inlined_call_operand.vmem [shape: f32[1,128], index: 7, kind: input, shape index: {}]
  %s8 = inlined_call_operand.hbm [shape: f32[2,64,128], index: 8, kind: output, shape index: {}]
  %s9 = sld [smem:[#allocation0]]
  $region85: #{tpu_custom_call.1} parent=0
    _
  %s11 = ssub.s32 1, %s9
  %s12 = scalar_select 0, %s11, %s9
  $region1: #{tpu_custom_call.1} parent=0
    #allocation2 [shape = 'u8[16384]{0}', space=vmem, size = 0x4000, scoped, tag = 'input window, operand 0']
    #allocation3 [shape = 's32[2]{0}', space=sflag, size = 0x8, scoped, tag = 'scoped memory for tpu_custom_call.1']
    #allocation4 [shape = 's32[2]{0}', space=sflag, size = 0x8, scoped, tag = 'scoped memory for tpu_custom_call.1']
    #allocation5 [shape = 'u8[16384]{0}', space=vmem, size = 0x4000, scoped, tag = 'input window, operand 1']
    #allocation6 [shape = 's32[2]{0}', space=sflag, size = 0x8, scoped, tag = 'scoped memory for tpu_custom_call.1']
    #allocation7 [shape = 'u8[16384]{0}', space=vmem, size = 0x4000, scoped, tag = 'input window, operand 2']
    #allocation8 [shape = 'u8[4096]{0}', space=vmem, size = 0x1000, scoped, tag = 'input window, operand 4, single buffered']
    #allocation9 [shape = 's32[1]{0}', space=sflag, size = 0x4, scoped, tag = 'scoped memory for tpu_custom_call.1']
    #allocation10 [shape = 'u8[32768]{0}', space=vmem, size = 0x8000, scoped, tag = 'input window, operand 6, single buffered']
    #allocation11 [shape = 'u8[16384]{0}', space=vmem, size = 0x4000, scoped, tag = 'output window, operand 0']
    %13 = vsyncpa [#allocation3], 0
    %s14 = scalar_lea.sflag [#allocation3], 1
    %15 = vsyncpa %s14, 0
    %16 = vsyncpa [#allocation6], 0
    %s17 = scalar_lea.sflag [#allocation6], 1
    %18 = vsyncpa %s17, 0
    %19 = vsyncpa [#allocation9], 0
    %20 = vsyncpa [#allocation4], 0
    %s21 = scalar_lea.sflag [#allocation4], 1
    %22 = vsyncpa %s21, 0
    loop: start=0, step=1, limit=10
    $region2: #{tpu_custom_call.1} parent=1 // loop_pre_header
      _
    $region3: #{tpu_custom_call.1} parent=1 // loop_header
      %s24 = sphi 0, %s28
      %p25 = scmp.ge.s32.totalorder %s24, 10
      %s31 = sphi 0, %s43
      %s32 = sphi 0, %s39
      %s33 = sphi 0, %s31
      %s34 = sphi 0, %s32
      %s35 = sphi 0, %s33
      %s36 = sphi 0, %s34
      %s48 = sphi 0, %s50
      %s51 = sphi 0, %s48
      %s52 = sphi 0, %s51
      %s68 = sphi 0, %s52
      %s82 = sphi 0, %s84
      %s85 = sphi 0, %s82
      %s86 = sphi 0, %s85
      %s102 = sphi 0, %s86
      %s116 = sphi 0, %s118
      %s119 = sphi 0, %s116
      %s120 = sphi 0, %s119
      %s136 = sphi 0, %s120
      %s140 = sphi 0, %s140
      %s142 = sphi 0, %s140
      %s143 = sphi 0, %s142
      %s157 = sphi 0, %s143
      %s161 = sphi 0, %s161
      %s163 = sphi 0, %s161
      %s164 = sphi 0, %s163
      %s178 = sphi 0, %s164
      %s182 = sphi 0, %s182
      %s184 = sphi 0, %s182
      %s185 = sphi 0, %s184
      %s199 = sphi 0, %s185
      %s203 = sphi 0, %s203
      %s205 = sphi 0, %s203
      %s206 = sphi 0, %s205
      %s220 = sphi 0, %s206
      %s224 = sphi 0, %s224
      %s226 = sphi 0, %s224
      %s227 = sphi 0, %s226
      %s241 = sphi 0, %s227
      %s249 = sphi 0, %s251
      %s252 = sphi 0, %s249
      %s253 = sphi 0, %s252
      %s269 = sphi 0, %s253
    $region4: #{tpu_custom_call.1} parent=1 // loop_header_branch
      %27 = sbr.rel (%p25) target = $region8
    $region5: #{tpu_custom_call.1} parent=1 // loop_body
      %s29 = ssub.s32 %s24, 1
      %s30 = ssub.s32 %s24, 2
      %s37 = sadd.s32 1, %s32
      %p38 = scmp.ge.s32.totalorder %s37, 4
      %s39 = scalar_select %p38, 0, %s37
      %s40 = sadd.s32 1, %s31
      %s41 = scalar_select %p38, %s40, %s31
      %p42 = scmp.ge.s32.totalorder %s41, 2
      %s43 = scalar_select %p42, 0, %s41
      %s44 = ssub.s32 %s31, %s43
      %s45 = ssub.s32 %s32, %s39
      %s46 = sor.u32 %s44, %s45
      %p47 = scmp.eq.s32.totalorder %s46, 0
      %s49 = sadd.s32 %s48, 1
      %s50 = scalar_select %p47, %s48, %s49
      %p53 = pneg %p47
      %p54 = scmp.eq.s32.totalorder %s24, 7
      %p55 = por %p53, %p54
      %p56 = scmp.ne.s32.totalorder %s48, %s51
      %p57 = scmp.eq.s32.totalorder %s24, 0
      %p58 = por %p56, %p57
      %p59 = scmp.ne.s32.totalorder %s48, %s51
      %p60 = scmp.eq.s32.totalorder %s29, 7
      %p61 = por %p59, %p60
      %p62 = scmp.ne.s32.totalorder %s51, %s52
      %p63 = scmp.eq.s32.totalorder %s29, 0
      %p64 = por %p62, %p63
      %p65 = scmp.ne.s32.totalorder %s51, %s52
      %p66 = scmp.eq.s32.totalorder %s30, 7
      %p67 = por %p65, %p66
      %p69 = scmp.ne.s32.totalorder %s52, %s68
      %p70 = scmp.eq.s32.totalorder %s30, 0
      %p71 = por %p69, %p70
      %s72 = ssub.s32 %s32, 1
      %p73 = scmp.gt.s32.totalorder %s72, 0
      %s74 = scalar_select %p73, %s72, 0
      %s75 = ssub.s32 %s39, 1
      %p76 = scmp.gt.s32.totalorder %s75, 0
      %s77 = scalar_select %p76, %s75, 0
      %s78 = ssub.s32 %s31, %s43
      %s79 = ssub.s32 %s74, %s77
      %s80 = sor.u32 %s78, %s79
      %p81 = scmp.eq.s32.totalorder %s80, 0
      %s83 = sadd.s32 %s82, 1
      %s84 = scalar_select %p81, %s82, %s83
      %p87 = pneg %p81
      %p88 = scmp.eq.s32.totalorder %s24, 7
      %p89 = por %p87, %p88
      %p90 = scmp.ne.s32.totalorder %s82, %s85
      %p91 = scmp.eq.s32.totalorder %s24, 0
      %p92 = por %p90, %p91
      %p93 = scmp.ne.s32.totalorder %s82, %s85
      %p94 = scmp.eq.s32.totalorder %s29, 7
      %p95 = por %p93, %p94
      %p96 = scmp.ne.s32.totalorder %s85, %s86
      %p97 = scmp.eq.s32.totalorder %s29, 0
      %p98 = por %p96, %p97
      %p99 = scmp.ne.s32.totalorder %s85, %s86
      %p100 = scmp.eq.s32.totalorder %s30, 7
      %p101 = por %p99, %p100
      %p103 = scmp.ne.s32.totalorder %s86, %s102
      %p104 = scmp.eq.s32.totalorder %s30, 0
      %p105 = por %p103, %p104
      %s106 = sadd.s32 %s32, 1
      %p107 = scmp.lt.s32.totalorder %s106, 3
      %s108 = scalar_select %p107, %s106, 3
      %s109 = sadd.s32 %s39, 1
      %p110 = scmp.lt.s32.totalorder %s109, 3
      %s111 = scalar_select %p110, %s109, 3
      %s112 = ssub.s32 %s31, %s43
      %s113 = ssub.s32 %s108, %s111
      %s114 = sor.u32 %s112, %s113
      %p115 = scmp.eq.s32.totalorder %s114, 0
      %s117 = sadd.s32 %s116, 1
      %s118 = scalar_select %p115, %s116, %s117
      %p121 = pneg %p115
      %p122 = scmp.eq.s32.totalorder %s24, 7
      %p123 = por %p121, %p122
      %p124 = scmp.ne.s32.totalorder %s116, %s119
      %p125 = scmp.eq.s32.totalorder %s24, 0
      %p126 = por %p124, %p125
      %p127 = scmp.ne.s32.totalorder %s116, %s119
      %p128 = scmp.eq.s32.totalorder %s29, 7
      %p129 = por %p127, %p128
      %p130 = scmp.ne.s32.totalorder %s119, %s120
      %p131 = scmp.eq.s32.totalorder %s29, 0
      %p132 = por %p130, %p131
      %p133 = scmp.ne.s32.totalorder %s119, %s120
      %p134 = scmp.eq.s32.totalorder %s30, 7
      %p135 = por %p133, %p134
      %p137 = scmp.ne.s32.totalorder %s120, %s136
      %p138 = scmp.eq.s32.totalorder %s30, 0
      %p139 = por %p137, %p138
      %s141 = sadd.s32 %s140, 1
      %p144 = scmp.eq.s32.totalorder %s24, 7
      %p145 = scmp.ne.s32.totalorder %s140, %s142
      %p146 = scmp.eq.s32.totalorder %s24, 0
      %p147 = por %p145, %p146
      %p148 = scmp.ne.s32.totalorder %s140, %s142
      %p149 = scmp.eq.s32.totalorder %s29, 7
      %p150 = por %p148, %p149
      %p151 = scmp.ne.s32.totalorder %s142, %s143
      %p152 = scmp.eq.s32.totalorder %s29, 0
      %p153 = por %p151, %p152
      %p154 = scmp.ne.s32.totalorder %s142, %s143
      %p155 = scmp.eq.s32.totalorder %s30, 7
      %p156 = por %p154, %p155
      %p158 = scmp.ne.s32.totalorder %s143, %s157
      %p159 = scmp.eq.s32.totalorder %s30, 0
      %p160 = por %p158, %p159
      %s162 = sadd.s32 %s161, 1
      %p165 = scmp.eq.s32.totalorder %s24, 7
      %p166 = scmp.ne.s32.totalorder %s161, %s163
      %p167 = scmp.eq.s32.totalorder %s24, 0
      %p168 = por %p166, %p167
      %p169 = scmp.ne.s32.totalorder %s161, %s163
      %p170 = scmp.eq.s32.totalorder %s29, 7
      %p171 = por %p169, %p170
      %p172 = scmp.ne.s32.totalorder %s163, %s164
      %p173 = scmp.eq.s32.totalorder %s29, 0
      %p174 = por %p172, %p173
      %p175 = scmp.ne.s32.totalorder %s163, %s164
      %p176 = scmp.eq.s32.totalorder %s30, 7
      %p177 = por %p175, %p176
      %p179 = scmp.ne.s32.totalorder %s164, %s178
      %p180 = scmp.eq.s32.totalorder %s30, 0
      %p181 = por %p179, %p180
      %s183 = sadd.s32 %s182, 1
      %p186 = scmp.eq.s32.totalorder %s24, 7
      %p187 = scmp.ne.s32.totalorder %s182, %s184
      %p188 = scmp.eq.s32.totalorder %s24, 0
      %p189 = por %p187, %p188
      %p190 = scmp.ne.s32.totalorder %s182, %s184
      %p191 = scmp.eq.s32.totalorder %s29, 7
      %p192 = por %p190, %p191
      %p193 = scmp.ne.s32.totalorder %s184, %s185
      %p194 = scmp.eq.s32.totalorder %s29, 0
      %p195 = por %p193, %p194
      %p196 = scmp.ne.s32.totalorder %s184, %s185
      %p197 = scmp.eq.s32.totalorder %s30, 7
      %p198 = por %p196, %p197
      %p200 = scmp.ne.s32.totalorder %s185, %s199
      %p201 = scmp.eq.s32.totalorder %s30, 0
      %p202 = por %p200, %p201
      %s204 = sadd.s32 %s203, 1
      %p207 = scmp.eq.s32.totalorder %s24, 7
      %p208 = scmp.ne.s32.totalorder %s203, %s205
      %p209 = scmp.eq.s32.totalorder %s24, 0
      %p210 = por %p208, %p209
      %p211 = scmp.ne.s32.totalorder %s203, %s205
      %p212 = scmp.eq.s32.totalorder %s29, 7
      %p213 = por %p211, %p212
      %p214 = scmp.ne.s32.totalorder %s205, %s206
      %p215 = scmp.eq.s32.totalorder %s29, 0
      %p216 = por %p214, %p215
      %p217 = scmp.ne.s32.totalorder %s205, %s206
      %p218 = scmp.eq.s32.totalorder %s30, 7
      %p219 = por %p217, %p218
      %p221 = scmp.ne.s32.totalorder %s206, %s220
      %p222 = scmp.eq.s32.totalorder %s30, 0
      %p223 = por %p221, %p222
      %s225 = sadd.s32 %s224, 1
      %p228 = scmp.eq.s32.totalorder %s24, 7
      %p229 = scmp.ne.s32.totalorder %s224, %s226
      %p230 = scmp.eq.s32.totalorder %s24, 0
      %p231 = por %p229, %p230
      %p232 = scmp.ne.s32.totalorder %s224, %s226
      %p233 = scmp.eq.s32.totalorder %s29, 7
      %p234 = por %p232, %p233
      %p235 = scmp.ne.s32.totalorder %s226, %s227
      %p236 = scmp.eq.s32.totalorder %s29, 0
      %p237 = por %p235, %p236
      %p238 = scmp.ne.s32.totalorder %s226, %s227
      %p239 = scmp.eq.s32.totalorder %s30, 7
      %p240 = por %p238, %p239
      %p242 = scmp.ne.s32.totalorder %s227, %s241
      %p243 = scmp.eq.s32.totalorder %s30, 0
      %p244 = por %p242, %p243
      %s245 = ssub.s32 %s31, %s43
      %s246 = ssub.s32 %s32, %s39
      %s247 = sor.u32 %s245, %s246
      %p248 = scmp.eq.s32.totalorder %s247, 0
      %s250 = sadd.s32 %s249, 1
      %s251 = scalar_select %p248, %s249, %s250
      %p254 = pneg %p248
      %p255 = scmp.eq.s32.totalorder %s24, 7
      %p256 = por %p254, %p255
      %p257 = scmp.ne.s32.totalorder %s249, %s252
      %p258 = scmp.eq.s32.totalorder %s24, 0
      %p259 = por %p257, %p258
      %p260 = scmp.ne.s32.totalorder %s249, %s252
      %p261 = scmp.eq.s32.totalorder %s29, 7
      %p262 = por %p260, %p261
      %p263 = scmp.ne.s32.totalorder %s252, %s253
      %p264 = scmp.eq.s32.totalorder %s29, 0
      %p265 = por %p263, %p264
      %p266 = scmp.ne.s32.totalorder %s252, %s253
      %p267 = scmp.eq.s32.totalorder %s30, 7
      %p268 = por %p266, %p267
      %p270 = scmp.ne.s32.totalorder %s253, %s269
      %p271 = scmp.eq.s32.totalorder %s30, 0
      %p272 = por %p270, %p271
      %p273 = scmp.le.s32.totalorder 1, %s24
      %p274 = scmp.lt.s32.totalorder %s24, 9
      %p275 = pnand %p273, %p274
      %p276 = pneg %p275
      // Predicated region
      $region9: #{tpu_custom_call.1} parent=5 // pred_check
        _
      $region10: #{tpu_custom_call.1} parent=5 // pred_check_branch
        %278 = sbr.rel (%p275) target = $region12
      $region11: #{tpu_custom_call.1} parent=5 // pred_region
        %s279 = ssub.s32 %s24, 1
        // Predicated region
        $region13: #{tpu_custom_call.1} parent=11 // pred_check
          %p280 = pneg %p153
        $region14: #{tpu_custom_call.1} parent=11 // pred_check_branch
          %282 = sbr.rel (%p280) target = $region16
        $region15: #{tpu_custom_call.1} parent=11 // pred_region
          _
        $region16: #{tpu_custom_call.1} parent=11 // pred_fallthru
          _
        // Predicated region
        $region17: #{tpu_custom_call.1} parent=11 // pred_check
          %p283 = pneg %p174
        $region18: #{tpu_custom_call.1} parent=11 // pred_check_branch
          %285 = sbr.rel (%p283) target = $region20
        $region19: #{tpu_custom_call.1} parent=11 // pred_region
          %s287 = ssub.s32 128, 128
          %288 = vsyncadd [#allocation9], %s287
          %s289 = sshll.u32 [#allocation8], 4
          %s290 = int_to_ptr.vmem [resolvable:$true] %s289
          %295 = dma.hbm_to_vmem [thread:$0]  %s4, 128, %s290, [#allocation9], 64, 64, 4
        $region20: #{tpu_custom_call.1} parent=11 // pred_fallthru
          _
        // Predicated region
        $region21: #{tpu_custom_call.1} parent=11 // pred_check
          %p296 = pneg %p195
        $region22: #{tpu_custom_call.1} parent=11 // pred_check_branch
          %298 = sbr.rel (%p296) target = $region24
        $region23: #{tpu_custom_call.1} parent=11 // pred_region
          _
        $region24: #{tpu_custom_call.1} parent=11 // pred_fallthru
          _
        // Predicated region
        $region25: #{tpu_custom_call.1} parent=11 // pred_check
          %p299 = pneg %p216
        $region26: #{tpu_custom_call.1} parent=11 // pred_check_branch
          %301 = sbr.rel (%p299) target = $region28
        $region27: #{tpu_custom_call.1} parent=11 // pred_region
          %s303 = ssub.s32 1024, 1024
          %304 = vsyncadd [#allocation9], %s303
          %s305 = sshll.u32 [#allocation10], 4
          %s306 = int_to_ptr.vmem [resolvable:$true] %s305
          %311 = dma.hbm_to_vmem [thread:$0]  %s6, 1024, %s306, [#allocation9], 64, 64, 4
        $region28: #{tpu_custom_call.1} parent=11 // pred_fallthru
          _
        // Predicated region
        $region29: #{tpu_custom_call.1} parent=11 // pred_check
          %p312 = pneg %p237
        $region30: #{tpu_custom_call.1} parent=11 // pred_check_branch
          %314 = sbr.rel (%p312) target = $region32
        $region31: #{tpu_custom_call.1} parent=11 // pred_region
          _
        $region32: #{tpu_custom_call.1} parent=11 // pred_fallthru
          _
      $region12: #{tpu_custom_call.1} parent=5 // pred_fallthru
        _
      %p315 = scmp.lt.s32.totalorder %s24, 8
      // Predicated region
      $region33: #{tpu_custom_call.1} parent=5 // pred_check
        %p316 = pneg %p315
      $region34: #{tpu_custom_call.1} parent=5 // pred_check_branch
        %318 = sbr.rel (%p316) target = $region36
      $region35: #{tpu_custom_call.1} parent=5 // pred_region
        // Predicated region
        $region37: #{tpu_custom_call.1} parent=35 // pred_check
          %p319 = pneg %p58
        $region38: #{tpu_custom_call.1} parent=35 // pred_check_branch
          %321 = sbr.rel (%p319) target = $region40
        $region39: #{tpu_custom_call.1} parent=35 // pred_region
          %s322 = sand.u32 %s48, 1
          %s323 = scalar_lea.sflag [#allocation3], %s322
          %s324 = sand.u32 %s48, 1
          %s325 = smul.addr %s324, 16
          %s326 = scalar_lea.vmem [#allocation2], %s325
          %s327 = smul.u32 2, %s32
          %s329 = ssub.s32 256, 256
          %330 = vsyncadd %s323, %s329
          %s331 = smul.addr %s31, 8
          %s332 = sadd.s32 %s327, %s331
          %s333 = smul.addr %s332, 128
          %s334 = scalar_lea.hbm %s0, %s333
          %s335 = sshll.u32 %s326, 4
          %s336 = int_to_ptr.vmem [resolvable:$true] %s335
          %341 = dma.hbm_to_vmem [thread:$0]  %s334, 256, %s336, %s323, 128, 128, 8
        $region40: #{tpu_custom_call.1} parent=35 // pred_fallthru
          _
        // Predicated region
        $region41: #{tpu_custom_call.1} parent=35 // pred_check
          %p342 = pneg %p92
        $region42: #{tpu_custom_call.1} parent=35 // pred_check_branch
          %344 = sbr.rel (%p342) target = $region44
        $region43: #{tpu_custom_call.1} parent=35 // pred_region
          %s345 = sand.u32 %s24, 1
          %s346 = scalar_lea.sflag [#allocation6], %s345
          %s347 = sand.u32 %s82, 1
          %s348 = smul.addr %s347, 16
          %s349 = scalar_lea.vmem [#allocation5], %s348
          %s350 = ssub.s32 %s32, 1
          %p351 = scmp.gt.s32.totalorder %s350, 0
          %s352 = scalar_select %p351, %s350, 0
          %s353 = smul.u32 2, %s352
          %s355 = ssub.s32 256, 256
          %356 = vsyncadd %s346, %s355
          %s357 = smul.addr %s31, 8
          %s358 = sadd.s32 %s353, %s357
          %s359 = smul.addr %s358, 128
          %s360 = scalar_lea.hbm %s1, %s359
          %s361 = sshll.u32 %s349, 4
          %s362 = int_to_ptr.vmem [resolvable:$true] %s361
          %367 = dma.hbm_to_vmem [thread:$0]  %s360, 256, %s362, %s346, 128, 128, 8
        $region44: #{tpu_custom_call.1} parent=35 // pred_fallthru
          _
        // Predicated region
        $region45: #{tpu_custom_call.1} parent=35 // pred_check
          %p368 = pneg %p126
        $region46: #{tpu_custom_call.1} parent=35 // pred_check_branch
          %370 = sbr.rel (%p368) target = $region48
        $region47: #{tpu_custom_call.1} parent=35 // pred_region
          %s371 = sand.u32 %s24, 1
          %s372 = scalar_lea.sflag [#allocation6], %s371
          %s373 = sand.u32 %s116, 1
          %s374 = smul.addr %s373, 16
          %s375 = scalar_lea.vmem [#allocation7], %s374
          %s376 = sadd.s32 %s32, 1
          %p377 = scmp.lt.s32.totalorder %s376, 3
          %s378 = scalar_select %p377, %s376, 3
          %s379 = smul.u32 2, %s378
          %s381 = ssub.s32 256, 256
          %382 = vsyncadd %s372, %s381
          %s383 = smul.addr %s31, 8
          %s384 = sadd.s32 %s379, %s383
          %s385 = smul.addr %s384, 128
          %s386 = scalar_lea.hbm %s2, %s385
          %s387 = sshll.u32 %s375, 4
          %s388 = int_to_ptr.vmem [resolvable:$true] %s387
          %393 = dma.hbm_to_vmem [thread:$0]  %s386, 256, %s388, %s372, 128, 128, 8
        $region48: #{tpu_custom_call.1} parent=35 // pred_fallthru
          _
      $region36: #{tpu_custom_call.1} parent=5 // pred_fallthru
        _
      %p394 = scmp.le.s32.totalorder 1, %s24
      %p395 = scmp.lt.s32.totalorder %s24, 9
      %p396 = pnand %p394, %p395
      %p397 = pneg %p396
      // Predicated region
      $region49: #{tpu_custom_call.1} parent=5 // pred_check
        _
      $region50: #{tpu_custom_call.1} parent=5 // pred_check_branch
        %399 = sbr.rel (%p396) target = $region52
      $region51: #{tpu_custom_call.1} parent=5 // pred_region
        %s400 = ssub.s32 %s24, 1
        %s401 = sand.u32 %s51, 1
        %s402 = scalar_lea.sflag [#allocation3], %s401
        %s403 = sand.u32 %s51, 1
        %s404 = smul.addr %s403, 16
        %s405 = scalar_lea.vmem [#allocation2], %s404
        // Predicated region
        $region53: #{tpu_custom_call.1} parent=51 // pred_check
          %p406 = pneg %p64
        $region54: #{tpu_custom_call.1} parent=51 // pred_check_branch
          %408 = sbr.rel (%p406) target = $region56
        $region55: #{tpu_custom_call.1} parent=51 // pred_region
          %409 = dma.done %s402, 256
        $region56: #{tpu_custom_call.1} parent=51 // pred_fallthru
          _
        %s410 = sand.u32 %s29, 1
        %s411 = scalar_lea.sflag [#allocation6], %s410
        %s412 = sand.u32 %s85, 1
        %s413 = smul.addr %s412, 16
        %s414 = scalar_lea.vmem [#allocation5], %s413
        // Predicated region
        $region57: #{tpu_custom_call.1} parent=51 // pred_check
          %p415 = pneg %p98
        $region58: #{tpu_custom_call.1} parent=51 // pred_check_branch
          %417 = sbr.rel (%p415) target = $region60
        $region59: #{tpu_custom_call.1} parent=51 // pred_region
          %418 = dma.done %s411, 256
        $region60: #{tpu_custom_call.1} parent=51 // pred_fallthru
          _
        %s419 = sand.u32 %s29, 1
        %s420 = scalar_lea.sflag [#allocation6], %s419
        %s421 = sand.u32 %s119, 1
        %s422 = smul.addr %s421, 16
        %s423 = scalar_lea.vmem [#allocation7], %s422
        // Predicated region
        $region61: #{tpu_custom_call.1} parent=51 // pred_check
          %p424 = pneg %p132
        $region62: #{tpu_custom_call.1} parent=51 // pred_check_branch
          %426 = sbr.rel (%p424) target = $region64
        $region63: #{tpu_custom_call.1} parent=51 // pred_region
          %427 = dma.done %s420, 256
        $region64: #{tpu_custom_call.1} parent=51 // pred_fallthru
          _
        // Predicated region
        $region65: #{tpu_custom_call.1} parent=51 // pred_check
          %p428 = pneg %p174
        $region66: #{tpu_custom_call.1} parent=51 // pred_check_branch
          %430 = sbr.rel (%p428) target = $region68
        $region67: #{tpu_custom_call.1} parent=51 // pred_region
          %431 = dma.done [#allocation9], 128
        $region68: #{tpu_custom_call.1} parent=51 // pred_fallthru
          _
        // Predicated region
        $region69: #{tpu_custom_call.1} parent=51 // pred_check
          %p432 = pneg %p216
        $region70: #{tpu_custom_call.1} parent=51 // pred_check_branch
          %434 = sbr.rel (%p432) target = $region72
        $region71: #{tpu_custom_call.1} parent=51 // pred_region
          %435 = dma.done [#allocation9], 1024
        $region72: #{tpu_custom_call.1} parent=51 // pred_fallthru
          _
        %s436 = sand.u32 %s51, 1
        %s437 = scalar_lea.sflag [#allocation3], %s436
        %s438 = sand.u32 %s51, 1
        %s439 = smul.addr %s438, 16
        %s440 = scalar_lea.vmem [#allocation2], %s439
        %p441 = pneg %p64
        %p442 = pneg %p61
        %s443 = sand.u32 %s29, 1
        %s444 = scalar_lea.sflag [#allocation6], %s443
        %s445 = sand.u32 %s85, 1
        %s446 = smul.addr %s445, 16
        %s447 = scalar_lea.vmem [#allocation5], %s446
        %p448 = pneg %p98
        %p449 = pneg %p95
        %s450 = sand.u32 %s29, 1
        %s451 = scalar_lea.sflag [#allocation6], %s450
        %s452 = sand.u32 %s119, 1
        %s453 = smul.addr %s452, 16
        %s454 = scalar_lea.vmem [#allocation7], %s453
        %p455 = pneg %p132
        %p456 = pneg %p129
        %p457 = pneg %p153
        %p458 = pneg %p150
        %p459 = pneg %p174
        %p460 = pneg %p171
        %p461 = pneg %p195
        %p462 = pneg %p192
        %p463 = pneg %p216
        %p464 = pneg %p213
        %p465 = pneg %p237
        %p466 = pneg %p234
        %p467 = pneg %p265
        %p468 = pneg %p262
        %s469 = sand.u32 %s252, 1
        %s470 = scalar_lea.sflag [#allocation4], %s469
        %s471 = sand.u32 %s252, 1
        %s472 = smul.addr %s471, 16
        %s473 = scalar_lea.vmem [#allocation11], %s472
        %s474 = smul.u32 2, %s34
        %s475 = ssub.s32 %s34, 1
        %p476 = scmp.gt.s32.totalorder %s475, 0
        %s477 = scalar_select %p476, %s475, 0
        %s478 = smul.u32 2, %s477
        %s479 = sadd.s32 %s34, 1
        %p480 = scmp.lt.s32.totalorder %s479, 3
        %s481 = scalar_select %p480, %s479, 3
        %s482 = smul.u32 2, %s481
        %s483 = smul.u32 2, %s34
        %v485 = vld [vmem:[%s405] sm:$0xff]
        %v486 = vld [vmem:[%s405 + $0x8] sm:$0xff]
        %v487 = vld [vmem:[%s414] sm:$0xff]
        %v488 = vld [vmem:[%s414 + $0x8] sm:$0xff]
        %p489 = scmp.gt.s32.totalorder %s34, 0
        %s490 = scalar_select %p489, 1, 0
        %s491 = scvt.s32.f32 %s490
        %v492 = vstv %s491
        %v493 = vmul.f32 %v487, %v492
        %v494 = vmul.f32 %v488, %v492
        %v495 = vpack.c.bf16 %v494, %v493
        %v496 = vld [vmem:[%s423] sm:$0xff]
        %v497 = vld [vmem:[%s423 + $0x8] sm:$0xff]
        %p498 = scmp.lt.s32.totalorder %s34, 3
        %s499 = scalar_select %p498, 1, 0
        %s500 = scvt.s32.f32 %s499
        %v501 = vstv %s500
        %v502 = vmul.f32 %v496, %v501
        %v503 = vmul.f32 %v497, %v501
        %v504 = vpack.c.bf16 %v503, %v502
        %v505 = vld [vmem:[%s3] sm:$0xf]
        %v506 = vld [vmem:[%s3 + $0x4] sm:$0xf]
        %v507 = vpack.c.bf16 %v486, %v485
        %v508 = vld [vmem:[#allocation8] sm:$0xf]
        %v509 = vld [vmem:[#allocation8 + $0x4] sm:$0xf]
        %v512 = vunpack.c.l.b16 %v508
        %v513 = vunpack.c.l.b16 %v509
        %v514 = vpack.c.b16 %v513, %v512
        %vm515 = vcmask 130048
        %v517 = vsel %vm515, %v514, 0
        %519 = vmatprep.subr.bf16.mxu0 0
        %520 = vmatpush1.bf16.msra.mxu0 %v495
        %521 = vmatprep.subr.bf16.mxu0 0
        %522 = vmatpush1.bf16.msra.mxu0 0
        %523 = vmatprep.subr.bf16.mxu0 0
        %524 = vmatpush1.bf16.msra.mxu0 0
        %525 = vmatprep.subr.bf16.mxu0 0
        %526 = vmatpush1.bf16.msra.mxu0 0
        %527 = vmatprep.subr.bf16.mxu0 0
        %528 = vmatpush1.bf16.msra.mxu0 0
        %529 = vmatprep.subr.bf16.mxu0 0
        %530 = vmatpush1.bf16.msra.mxu0 0
        %531 = vmatprep.subr.bf16.mxu0 0
        %532 = vmatpush1.bf16.msra.mxu0 0
        %533 = vmatprep.subr.bf16.mxu0 0
        %534 = vmatpush1.bf16.msra.mxu0 0
        %535 = vmatprep.subr.bf16.mxu0 0
        %536 = vmatpush1.bf16.msra.mxu0 0
        %537 = vmatprep.subr.bf16.mxu0 0
        %538 = vmatpush1.bf16.msra.mxu0 0
        %539 = vmatprep.subr.bf16.mxu0 0
        %540 = vmatpush1.bf16.msra.mxu0 0
        %541 = vmatprep.subr.bf16.mxu0 0
        %542 = vmatpush1.bf16.msra.mxu0 0
        %543 = vmatprep.subr.bf16.mxu0 0
        %544 = vmatpush1.bf16.msra.mxu0 0
        %545 = vmatprep.subr.bf16.mxu0 0
        %546 = vmatpush1.bf16.msra.mxu0 0
        %547 = vmatprep.subr.bf16.mxu0 0
        %548 = vmatpush1.bf16.msra.mxu0 0
        %549 = vmatprep.subr.bf16.mxu0 0
        %550 = vmatpush1.bf16.msra.mxu0 0
        %551 = vmatprep.mubr.bf16.mxu0 0
        %552 = vmatmul.mubr.bf16.gmra.mrb[0].mxu0 %v517
        %v553 = vpop.f32.mrb[0].mxu0
        %v554 = vadd.f32 0.0, %v553
        %v555 = vpop.f32.mrb[0].mxu0
        %v556 = vpop.f32.mrb[0].mxu0
        %v557 = vadd.f32 0.0, %v556
        %v558 = vpop.f32.mrb[0].mxu0
        %559 = vdwg.mxu0
        %v562 = vunpack.c.l.b16 %v505
        %v563 = vunpack.c.l.b16 %v506
        %v564 = vpack.c.b16 %v563, %v562
        %v566 = vsel %vm515, %v564, 0
        %568 = vmatprep.subr.bf16.mxu0 0
        %569 = vmatpush1.bf16.msra.mxu0 %v507
        %570 = vmatprep.subr.bf16.mxu0 0
        %571 = vmatpush1.bf16.msra.mxu0 0
        %572 = vmatprep.subr.bf16.mxu0 0
        %573 = vmatpush1.bf16.msra.mxu0 0
        %574 = vmatprep.subr.bf16.mxu0 0
        %575 = vmatpush1.bf16.msra.mxu0 0
        %576 = vmatprep.subr.bf16.mxu0 0
        %577 = vmatpush1.bf16.msra.mxu0 0
        %578 = vmatprep.subr.bf16.mxu0 0
        %579 = vmatpush1.bf16.msra.mxu0 0
        %580 = vmatprep.subr.bf16.mxu0 0
        %581 = vmatpush1.bf16.msra.mxu0 0
        %582 = vmatprep.subr.bf16.mxu0 0
        %583 = vmatpush1.bf16.msra.mxu0 0
        %584 = vmatprep.subr.bf16.mxu0 0
        %585 = vmatpush1.bf16.msra.mxu0 0
        %586 = vmatprep.subr.bf16.mxu0 0
        %587 = vmatpush1.bf16.msra.mxu0 0
        %588 = vmatprep.subr.bf16.mxu0 0
        %589 = vmatpush1.bf16.msra.mxu0 0
        %590 = vmatprep.subr.bf16.mxu0 0
        %591 = vmatpush1.bf16.msra.mxu0 0
        %592 = vmatprep.subr.bf16.mxu0 0
        %593 = vmatpush1.bf16.msra.mxu0 0
        %594 = vmatprep.subr.bf16.mxu0 0
        %595 = vmatpush1.bf16.msra.mxu0 0
        %596 = vmatprep.subr.bf16.mxu0 0
        %597 = vmatpush1.bf16.msra.mxu0 0
        %598 = vmatprep.subr.bf16.mxu0 0
        %599 = vmatpush1.bf16.msra.mxu0 0
        %600 = vmatprep.mubr.bf16.mxu0 0
        %601 = vmatmul.mubr.bf16.gmra.mrb[0].mxu0 %v566
        %v602 = vpop.f32.mrb[0].mxu0
        %v603 = vadd.f32 %v554, %v602
        %v604 = vpop.f32.mrb[0].mxu0
        %v605 = vpop.f32.mrb[0].mxu0
        %v606 = vadd.f32 %v557, %v605
        %v607 = vpop.f32.mrb[0].mxu0
        %608 = vdwg.mxu0
        %v609 = vld [vmem:[%s5] sm:$0xf]
        %v610 = vld [vmem:[%s5 + $0x4] sm:$0xf]
        %v613 = vunpack.c.l.b16 %v609
        %v614 = vunpack.c.l.b16 %v610
        %v615 = vpack.c.b16 %v614, %v613
        %v617 = vsel %vm515, %v615, 0
        %619 = vmatprep.subr.bf16.mxu0 0
        %620 = vmatpush1.bf16.msra.mxu0 %v504
        %621 = vmatprep.subr.bf16.mxu0 0
        %622 = vmatpush1.bf16.msra.mxu0 0
        %623 = vmatprep.subr.bf16.mxu0 0
        %624 = vmatpush1.bf16.msra.mxu0 0
        %625 = vmatprep.subr.bf16.mxu0 0
        %626 = vmatpush1.bf16.msra.mxu0 0
        %627 = vmatprep.subr.bf16.mxu0 0
        %628 = vmatpush1.bf16.msra.mxu0 0
        %629 = vmatprep.subr.bf16.mxu0 0
        %630 = vmatpush1.bf16.msra.mxu0 0
        %631 = vmatprep.subr.bf16.mxu0 0
        %632 = vmatpush1.bf16.msra.mxu0 0
        %633 = vmatprep.subr.bf16.mxu0 0
        %634 = vmatpush1.bf16.msra.mxu0 0
        %635 = vmatprep.subr.bf16.mxu0 0
        %636 = vmatpush1.bf16.msra.mxu0 0
        %637 = vmatprep.subr.bf16.mxu0 0
        %638 = vmatpush1.bf16.msra.mxu0 0
        %639 = vmatprep.subr.bf16.mxu0 0
        %640 = vmatpush1.bf16.msra.mxu0 0
        %641 = vmatprep.subr.bf16.mxu0 0
        %642 = vmatpush1.bf16.msra.mxu0 0
        %643 = vmatprep.subr.bf16.mxu0 0
        %644 = vmatpush1.bf16.msra.mxu0 0
        %645 = vmatprep.subr.bf16.mxu0 0
        %646 = vmatpush1.bf16.msra.mxu0 0
        %647 = vmatprep.subr.bf16.mxu0 0
        %648 = vmatpush1.bf16.msra.mxu0 0
        %649 = vmatprep.subr.bf16.mxu0 0
        %650 = vmatpush1.bf16.msra.mxu0 0
        %651 = vmatprep.mubr.bf16.mxu0 0
        %652 = vmatmul.mubr.bf16.gmra.mrb[0].mxu0 %v617
        %v653 = vpop.f32.mrb[0].mxu0
        %v654 = vadd.f32 0.0, %v653
        %v655 = vpop.f32.mrb[0].mxu0
        %v656 = vpop.f32.mrb[0].mxu0
        %v657 = vadd.f32 0.0, %v656
        %v658 = vpop.f32.mrb[0].mxu0
        %659 = vdwg.mxu0
        %v660 = vadd.f32 %v603, %v654
        %v661 = vadd.f32 %v606, %v657
        %v662 = vpack.c.bf16 %v661, %v660
        %v663 = vld [vmem:[#allocation10] sm:$0xf]
        %v664 = vld [vmem:[#allocation10 + $0x4] sm:$0xf]
        %v665 = vld [vmem:[#allocation10 + $0x8] sm:$0xf]
        %v666 = vld [vmem:[#allocation10 + $0xc] sm:$0xf]
        %v667 = vld [vmem:[#allocation10 + $0x10] sm:$0xf]
        %v668 = vld [vmem:[#allocation10 + $0x14] sm:$0xf]
        %v669 = vld [vmem:[#allocation10 + $0x18] sm:$0xf]
        %v670 = vld [vmem:[#allocation10 + $0x1c] sm:$0xf]
        %v671 = vld [vmem:[#allocation10 + $0x20] sm:$0xf]
        %v672 = vld [vmem:[#allocation10 + $0x24] sm:$0xf]
        %v673 = vld [vmem:[#allocation10 + $0x28] sm:$0xf]
        %v674 = vld [vmem:[#allocation10 + $0x2c] sm:$0xf]
        %v675 = vld [vmem:[#allocation10 + $0x30] sm:$0xf]
        %v676 = vld [vmem:[#allocation10 + $0x34] sm:$0xf]
        %v677 = vld [vmem:[#allocation10 + $0x38] sm:$0xf]
        %v678 = vld [vmem:[#allocation10 + $0x3c] sm:$0xf]
        %v695 = vunpack.c.l.b16 %v663
        %v696 = vunpack.c.l.b16 %v664
        %v697 = vunpack.c.l.b16 %v665
        %v698 = vunpack.c.l.b16 %v666
        %v699 = vunpack.c.l.b16 %v667
        %v700 = vunpack.c.l.b16 %v668
        %v701 = vunpack.c.l.b16 %v669
        %v702 = vunpack.c.l.b16 %v670
        %v703 = vunpack.c.l.b16 %v671
        %v704 = vunpack.c.l.b16 %v672
        %v705 = vunpack.c.l.b16 %v673
        %v706 = vunpack.c.l.b16 %v674
        %v707 = vunpack.c.l.b16 %v675
        %v708 = vunpack.c.l.b16 %v676
        %v709 = vunpack.c.l.b16 %v677
        %v710 = vunpack.c.l.b16 %v678
        %v711 = vpack.c.b16 %v696, %v695
        %v712 = vpack.c.b16 %v698, %v697
        %v713 = vpack.c.b16 %v700, %v699
        %v714 = vpack.c.b16 %v702, %v701
        %v715 = vpack.c.b16 %v704, %v703
        %v716 = vpack.c.b16 %v706, %v705
        %v717 = vpack.c.b16 %v708, %v707
        %v718 = vpack.c.b16 %v710, %v709
        %727 = vmatprep.subr.bf16.mxu0 0
        %728 = vmatpush1.bf16.msra.mxu0 %v711
        %729 = vmatprep.subr.bf16.mxu0 0
        %730 = vmatpush1.bf16.msra.mxu0 %v712
        %731 = vmatprep.subr.bf16.mxu0 0
        %732 = vmatpush1.bf16.msra.mxu0 %v713
        %733 = vmatprep.subr.bf16.mxu0 0
        %734 = vmatpush1.bf16.msra.mxu0 %v714
        %735 = vmatprep.subr.bf16.mxu0 0
        %736 = vmatpush1.bf16.msra.mxu0 %v715
        %737 = vmatprep.subr.bf16.mxu0 0
        %738 = vmatpush1.bf16.msra.mxu0 %v716
        %739 = vmatprep.subr.bf16.mxu0 0
        %740 = vmatpush1.bf16.msra.mxu0 %v717
        %741 = vmatprep.subr.bf16.mxu0 0
        %742 = vmatpush1.bf16.msra.mxu0 %v718
        %743 = vmatprep.subr.bf16.mxu0 0
        %744 = vmatpush1.bf16.msra.mxu0 0
        %745 = vmatprep.subr.bf16.mxu0 0
        %746 = vmatpush1.bf16.msra.mxu0 0
        %747 = vmatprep.subr.bf16.mxu0 0
        %748 = vmatpush1.bf16.msra.mxu0 0
        %749 = vmatprep.subr.bf16.mxu0 0
        %750 = vmatpush1.bf16.msra.mxu0 0
        %751 = vmatprep.subr.bf16.mxu0 0
        %752 = vmatpush1.bf16.msra.mxu0 0
        %753 = vmatprep.subr.bf16.mxu0 0
        %754 = vmatpush1.bf16.msra.mxu0 0
        %755 = vmatprep.subr.bf16.mxu0 0
        %756 = vmatpush1.bf16.msra.mxu0 0
        %757 = vmatprep.subr.bf16.mxu0 0
        %758 = vmatpush1.bf16.msra.mxu0 0
        %759 = vmatprep.mubr.bf16.mxu0 0
        %760 = vmatmul.mubr.bf16.gmra.mrb[0].mxu0 %v662
        %v761 = vpop.f32.mrb[0].mxu0
        %v762 = vadd.f32 0.0, %v761
        %v763 = vpop.f32.mrb[0].mxu0
        %v764 = vpop.f32.mrb[0].mxu0
        %v765 = vadd.f32 0.0, %v764
        %v766 = vpop.f32.mrb[0].mxu0
        %767 = vdwg.mxu0
        %v768 = vadd.f32 %v485, %v762
        %v769 = vadd.f32 %v486, %v765
        %v770 = vld [vmem:[%s7] sm:$0x1]
        %v772 = vlaneseq
        %v773 = vshrl.u32 %v772, 7
        %v774 = vsub.s32 0, %v773
        %v775 = vrot.slane %v770, %v774
        %v777 = vadd.f32 %v768, %v775
        %v778 = vadd.f32 %v769, %v775
        %779 = vst [vmem:[%s473] sm:$0xff] %v777
        %780 = vst [vmem:[%s473 + $0x8] sm:$0xff] %v778
        %s781 = sand.u32 %s252, 1
        %s782 = scalar_lea.sflag [#allocation4], %s781
        %s783 = sand.u32 %s252, 1
        %s784 = smul.addr %s783, 16
        %s785 = scalar_lea.vmem [#allocation11], %s784
        // Predicated region
        $region73: #{tpu_custom_call.1} parent=51 // pred_check
          %p786 = pneg %p262
        $region74: #{tpu_custom_call.1} parent=51 // pred_check_branch
          %788 = sbr.rel (%p786) target = $region76
        $region75: #{tpu_custom_call.1} parent=51 // pred_region
          %s789 = smul.u32 2, %s34
          %s791 = ssub.s32 256, 256
          %792 = vsyncadd %s782, %s791
          %s793 = smul.addr %s33, 8
          %s794 = sadd.s32 %s789, %s793
          %s795 = smul.addr %s794, 128
          %s796 = scalar_lea.hbm %s8, %s795
          %s797 = sshll.u32 %s785, 4
          %s798 = int_to_ptr.vmem [resolvable:$true] %s797
          %803 = dma.vmem_to_hbm [thread:$0]  %s798, 256, %s796, %s782, 128, 128, 8
        $region76: #{tpu_custom_call.1} parent=51 // pred_fallthru
          _
      $region52: #{tpu_custom_call.1} parent=5 // pred_fallthru
        _
      %p804 = scmp.le.s32.totalorder 2, %s24
      // Predicated region
      $region77: #{tpu_custom_call.1} parent=5 // pred_check
        %p805 = pneg %p804
      $region78: #{tpu_custom_call.1} parent=5 // pred_check_branch
        %807 = sbr.rel (%p805) target = $region80
      $region79: #{tpu_custom_call.1} parent=5 // pred_region
        %s808 = ssub.s32 %s24, 2
        // Predicated region
        $region81: #{tpu_custom_call.1} parent=79 // pred_check
          %p809 = pneg %p268
        $region82: #{tpu_custom_call.1} parent=79 // pred_check_branch
          %811 = sbr.rel (%p809) target = $region84
        $region83: #{tpu_custom_call.1} parent=79 // pred_region
          %s812 = sand.u32 %s253, 1
          %s813 = scalar_lea.sflag [#allocation4], %s812
          %s814 = sand.u32 %s253, 1
          %s815 = smul.addr %s814, 16
          %s816 = scalar_lea.vmem [#allocation11], %s815
          %817 = dma.done %s813, 256
        $region84: #{tpu_custom_call.1} parent=79 // pred_fallthru
          _
      $region80: #{tpu_custom_call.1} parent=5 // pred_fallthru
        _
    $region6: #{tpu_custom_call.1} parent=1 // loop_footer
      %s28 = sadd.s32 1, %s24
    $region7: #{tpu_custom_call.1} parent=1 // loop_footer_branch
      %23 = sbr.rel target = $region3
    $region8: #{tpu_custom_call.1} parent=1 // loop_exit
      _
    %818 = vsyncpa [#allocation3], 1
    %s819 = scalar_lea.sflag [#allocation3], 1
    %820 = vsyncpa %s819, 1
    %821 = vsyncpa [#allocation6], 1
    %s822 = scalar_lea.sflag [#allocation6], 1
    %823 = vsyncpa %s822, 1
    %824 = vsyncpa [#allocation9], 1
    %825 = vsyncpa [#allocation4], 1
    %s826 = scalar_lea.sflag [#allocation4], 1
    %827 = vsyncpa %s826, 1

</llo_original>
